<compile_context>
chip_gen: v6e
topology: v6e:2x2x1
jax: 0.10.0
libtpu: 0.0.40
codegen_flags: <defaults>
</compile_context>

<pallas_src>
import jax
import jax.numpy as jnp
from jax.experimental import pallas as pl
from jax.experimental.pallas import tpu as pltpu


_BN_EPS = 1e-5


# ----------------------------------------------------------------------------
# In-kernel block: Conv1d(k=3,pad=1) + BatchNorm1d(eval) + ReLU + MaxPool1d(2)
# on a (bt, L, Cin) f32 tile that is already resident on-chip.
# ----------------------------------------------------------------------------
def _conv_bn_relu_pool(h3, w_ref, mul_ref, add_ref):
    bt, l, cin = h3.shape
    cout = w_ref.shape[2]
    m = bt * l

    # Fold the batch tile into the MXU M dimension (minor dim preserved).
    h = h3.reshape(m, cin)

    # Rows r-1 / r+1 via a one-row sublane shift.  Rows that would read across
    # a sequence boundary are exactly the rows conv padding=1 zeroes, so mask
    # them with an iota%L position mask (this also makes cross-sequence leakage
    # from the flat batch-folded layout impossible).
    zero_row = jnp.zeros((1, cin), h.dtype)
    h_prev = jnp.concatenate([zero_row, h[: m - 1]], axis=0)   # row r-1
    h_next = jnp.concatenate([h[1:], zero_row], axis=0)        # row r+1
    pos = jax.lax.broadcasted_iota(jnp.int32, (m, 1), 0) % l
    h_prev = jnp.where(pos == 0, 0.0, h_prev)
    h_next = jnp.where(pos == l - 1, 0.0, h_next)

    # Three K=Cin MXU pushes accumulated in f32 (no lane-axis im2col concat).
    # TODO(synk): layer1 (Cin=3) barely fills the MXU; a VPU multiply-add over
    # its 9 scalar taps would avoid a nearly-empty MXU pass (minor win).
    wd = w_ref.dtype
    acc = jnp.dot(h_prev.astype(wd), w_ref[0], preferred_element_type=jnp.float32)
    acc = acc + jnp.dot(h.astype(wd), w_ref[1], preferred_element_type=jnp.float32)
    acc = acc + jnp.dot(h_next.astype(wd), w_ref[2], preferred_element_type=jnp.float32)

    # Fused BatchNorm(eval) + ReLU epilogue (scale/shift folded at init).
    acc = jnp.maximum(acc * mul_ref[...] + add_ref[...], 0.0)

    # MaxPool1d(2), PyTorch floor semantics: drop the trailing odd element of
    # every sequence before pairing.
    l_out = l // 2
    acc3 = acc.reshape(bt, l, cout)
    if l % 2:
        acc3 = acc3[:, : 2 * l_out, :]
    pooled = jnp.max(acc3.reshape(bt * l_out, 2, cout), axis=1)
    return pooled.reshape(bt, l_out, cout)


# ----------------------------------------------------------------------------
# Fully fused forward kernel: conv blocks 1-3 + flatten + fc1 + fc2.
# ----------------------------------------------------------------------------
def _har_cnn_kernel(x_ref,
                    w1_ref, m1_ref, a1_ref,
                    w2_ref, m2_ref, a2_ref,
                    w3_ref, m3_ref, a3_ref,
                    wf1_ref, bf1_ref, wf2_ref, bf2_ref,
                    o_ref):
    h = x_ref[...]                                    # (bt, L, Cin) f32
    for w_ref, mul_ref, add_ref in ((w1_ref, m1_ref, a1_ref),
                                    (w2_ref, m2_ref, a2_ref),
                                    (w3_ref, m3_ref, a3_ref)):
        h = _conv_bn_relu_pool(h, w_ref, mul_ref, add_ref)

    # Channels-last flatten as a lane-aligned (256-wide) concat of time slices;
    # fc1's weight rows were pre-permuted at init to exactly this order.
    bt, l3, _ = h.shape
    pieces = [h[:, t, :] for t in range(l3)]
    hf = pieces[0] if l3 == 1 else jnp.concatenate(pieces, axis=1)   # (bt, feat)

    wd = wf1_ref.dtype
    z = jnp.dot(hf.astype(wd), wf1_ref[...],
                preferred_element_type=jnp.float32) + bf1_ref[...]
    # TODO(synk): nn.Dropout(0.5) is identity at inference (eval mode).
    out = jnp.dot(z.astype(wf2_ref.dtype), wf2_ref[...],
                  preferred_element_type=jnp.float32) + bf2_ref[...]
    o_ref[...] = out.astype(o_ref.dtype)


# ----------------------------------------------------------------------------
# Wrapper: one pallas_call, grid only over batch tiles.
# ----------------------------------------------------------------------------
def har_cnn_forward(x, params, *, block_batch=32):
    """x: (B, C, L) float32, PyTorch NCL convention."""
    b, c, l = x.shape
    w1, m1, a1 = params["layer1"]
    w2, m2, a2 = params["layer2"]
    w3, m3, a3 = params["layer3"]
    wf1, bf1, wf2, bf2 = params["fc"]
    num_classes = wf2.shape[1]

    # Batch tile: whole batch if small, otherwise a multiple of 8 so the 2-D
    # output block keeps its sublane dimension (8,128)-compatible.
    bt = b if b <= block_batch else max(8, (block_batch // 8) * 8)
    grid = (pl.cdiv(b, bt),)

    h = jnp.transpose(x, (0, 2, 1))                   # NCL -> NLC once, in HBM

    def _const(arr):
        zeros = (0,) * arr.ndim
        return pl.BlockSpec(arr.shape, lambda i: zeros)

    consts = (w1, m1, a1, w2, m2, a2, w3, m3, a3, wf1, bf1, wf2, bf2)
    return pl.pallas_call(
        _har_cnn_kernel,
        out_shape=jax.ShapeDtypeStruct((b, num_classes), jnp.float32),
        grid=grid,
        in_specs=[pl.BlockSpec((bt, l, c), lambda i: (i, 0, 0))]
                 + [_const(a) for a in consts],
        out_specs=pl.BlockSpec((bt, num_classes), lambda i: (i, 0)),
        compiler_params=pltpu.CompilerParams(
            dimension_semantics=("parallel",),        # shard tiles across TCs
            vmem_limit_bytes=48 * 1024 * 1024,        # weights ~6-7MB, 2x buf
        ),
        # TODO(synk): pipeline_mode=pl.Buffered(1) on the constant operands
        # would drop their redundant second pipeline buffer (v7x VMEM relief).
    )(h, *consts)


# ----------------------------------------------------------------------------
# Parameter construction (deterministic; PyTorch-default BN stats, eval mode).
# ----------------------------------------------------------------------------
def _conv_bn_layer(key, cin, cout):
    kw, kb = jax.random.split(key)
    # Tap-major conv weight (3, cin, cout): w[dk, ci, co] == torch_w[co, ci, dk].
    w = jax.random.normal(kw, (3, cin, cout), jnp.float32) / jnp.sqrt(3.0 * cin)
    bias = jax.random.normal(kb, (cout,), jnp.float32) * 0.01
    # BatchNorm1d eval defaults: gamma=1, beta=0, running_mean=0, running_var=1.
    gamma = jnp.ones((cout,), jnp.float32)
    beta = jnp.zeros((cout,), jnp.float32)
    r_mean = jnp.zeros((cout,), jnp.float32)
    r_var = jnp.ones((cout,), jnp.float32)
    mul = gamma / jnp.sqrt(r_var + _BN_EPS)
    add = beta + (bias - r_mean) * mul
    return w.astype(jnp.bfloat16), mul.reshape(1, cout), add.reshape(1, cout)


def init_params(key, num_channels, num_classes, sequence_length):
    k1, k2, k3, k4, k5, k6, k7 = jax.random.split(key, 7)
    # ((L//2)//2)//2 == L//8, so fc1's in_features always matches post-pool size.
    l3 = sequence_length // 8
    feat = 256 * l3
    # fc1 weight generated in torch channel-major flatten order (row c*l3 + t),
    # then rows permuted to channels-last order (row t*256 + c) so the conv
    # output can be flattened in-kernel without a transpose.
    w1_torch = jax.random.normal(k4, (feat, 512), jnp.float32) / jnp.sqrt(feat)
    w1 = w1_torch.reshape(256, l3, 512).transpose(1, 0, 2).reshape(feat, 512)
    return {
        "layer1": _conv_bn_layer(k1, num_channels, 64),
        "layer2": _conv_bn_layer(k2, 64, 128),
        "layer3": _conv_bn_layer(k3, 128, 256),
        "fc": (
            w1.astype(jnp.bfloat16),
            jax.random.normal(k5, (1, 512), jnp.float32) * 0.01,
            (jax.random.normal(k6, (512, num_classes), jnp.float32)
             / jnp.sqrt(512.0)).astype(jnp.bfloat16),
            jax.random.normal(k7, (1, num_classes), jnp.float32) * 0.01,
        ),
    }


if __name__ == "__main__":
    batch = 2
    num_channels = 3
    num_classes = 6

    key = jax.random.PRNGKey(0)
    kp_a, kx_a, kp_b, kx_b = jax.random.split(key, 4)

    # 1) even sequence-length chain: 16 -> 8 -> 4 -> 2.
    seq_a = 16
    params_a = init_params(kp_a, num_channels, num_classes, seq_a)
    x_a = jax.random.normal(kx_a, (batch, num_channels, seq_a), jnp.float32)
    out_a = har_cnn_forward(x_a, params_a)
    jax.block_until_ready(out_a)
    assert out_a.shape == (batch, num_classes), out_a.shape
    assert bool(jnp.all(jnp.isfinite(out_a)))

    # 2) odd intermediate lengths (down-scaled analogue of the real
    #    187 -> 93 -> 46 -> 23 chain): 22 -> 11 -> 5 -> 2.
    seq_b = 22
    params_b = init_params(kp_b, num_channels, num_classes, seq_b)
    x_b = jax.random.normal(kx_b, (batch, num_channels, seq_b), jnp.float32)
    out_b = har_cnn_forward(x_b, params_b)
    jax.block_until_ready(out_b)
    assert out_b.shape == (batch, num_classes), out_b.shape
    assert bool(jnp.all(jnp.isfinite(out_b)))

    print("KERNEL_OK")
</pallas_src>

<mosaic_0001>
module attributes {stable_mosaic.version = 11 : i64} {
  func.func @_har_cnn_kernel(%arg0: i32, %arg1: memref<2x16x3xf32, #tpu.memory_space<vmem>>, %arg2: memref<3x3x64xbf16, #tpu.memory_space<vmem>>, %arg3: memref<1x64xf32, #tpu.memory_space<vmem>>, %arg4: memref<1x64xf32, #tpu.memory_space<vmem>>, %arg5: memref<3x64x128xbf16, #tpu.memory_space<vmem>>, %arg6: memref<1x128xf32, #tpu.memory_space<vmem>>, %arg7: memref<1x128xf32, #tpu.memory_space<vmem>>, %arg8: memref<3x128x256xbf16, #tpu.memory_space<vmem>>, %arg9: memref<1x256xf32, #tpu.memory_space<vmem>>, %arg10: memref<1x256xf32, #tpu.memory_space<vmem>>, %arg11: memref<512x512xbf16, #tpu.memory_space<vmem>>, %arg12: memref<1x512xf32, #tpu.memory_space<vmem>>, %arg13: memref<512x6xbf16, #tpu.memory_space<vmem>>, %arg14: memref<1x6xf32, #tpu.memory_space<vmem>>, %arg15: memref<2x6xf32, #tpu.memory_space<vmem>>) attributes {dimension_semantics = [#tpu.dimension_semantics<parallel>], iteration_bounds = array<i64: 1>, scalar_prefetch = 0 : i64, scratch_operands = 0 : i64, tpu.core_type = #tpu.core_type<tc>, window_params = [{transform_indices = @transform_0, window_bounds = array<i64: 2, 16, 3>}, {pipeline_mode = #tpu.pipeline_mode<synchronous>, transform_indices = @transform_1, window_bounds = array<i64: 3, 3, 64>}, {pipeline_mode = #tpu.pipeline_mode<synchronous>, transform_indices = @transform_2, window_bounds = array<i64: 1, 64>}, {pipeline_mode = #tpu.pipeline_mode<synchronous>, transform_indices = @transform_3, window_bounds = array<i64: 1, 64>}, {pipeline_mode = #tpu.pipeline_mode<synchronous>, transform_indices = @transform_4, window_bounds = array<i64: 3, 64, 128>}, {pipeline_mode = #tpu.pipeline_mode<synchronous>, transform_indices = @transform_5, window_bounds = array<i64: 1, 128>}, {pipeline_mode = #tpu.pipeline_mode<synchronous>, transform_indices = @transform_6, window_bounds = array<i64: 1, 128>}, {pipeline_mode = #tpu.pipeline_mode<synchronous>, transform_indices = @transform_7, window_bounds = array<i64: 3, 128, 256>}, {pipeline_mode = #tpu.pipeline_mode<synchronous>, transform_indices = @transform_8, window_bounds = array<i64: 1, 256>}, {pipeline_mode = #tpu.pipeline_mode<synchronous>, transform_indices = @transform_9, window_bounds = array<i64: 1, 256>}, {pipeline_mode = #tpu.pipeline_mode<synchronous>, transform_indices = @transform_10, window_bounds = array<i64: 512, 512>}, {pipeline_mode = #tpu.pipeline_mode<synchronous>, transform_indices = @transform_11, window_bounds = array<i64: 1, 512>}, {pipeline_mode = #tpu.pipeline_mode<synchronous>, transform_indices = @transform_12, window_bounds = array<i64: 512, 6>}, {pipeline_mode = #tpu.pipeline_mode<synchronous>, transform_indices = @transform_13, window_bounds = array<i64: 1, 6>}, {transform_indices = @transform_14, window_bounds = array<i64: 2, 6>}]} {
    %c0 = arith.constant 0 : index
    %c0_0 = arith.constant 0 : index
    %c0_1 = arith.constant 0 : index
    %0 = vector.load %arg1[%c0, %c0_0, %c0_1] : memref<2x16x3xf32, #tpu.memory_space<vmem>>, vector<2x16x3xf32>
    %1 = vector.shape_cast %0 : vector<2x16x3xf32> to vector<32x3xf32>
    %cst = arith.constant 0.000000e+00 : f32
    %2 = vector.broadcast %cst : f32 to vector<1x3xf32>
    %3 = vector.extract_strided_slice %1 {offsets = [0, 0], sizes = [31, 3], strides = [1, 1]} : vector<32x3xf32> to vector<31x3xf32>
    %4 = tpu.concatenate %2, %3 in 0 : vector<1x3xf32>, vector<31x3xf32> -> vector<32x3xf32>
    %5 = vector.extract_strided_slice %1 {offsets = [1, 0], sizes = [31, 3], strides = [1, 1]} : vector<32x3xf32> to vector<31x3xf32>
    %6 = tpu.concatenate %5, %2 in 0 : vector<31x3xf32>, vector<1x3xf32> -> vector<32x3xf32>
    %7 = tpu.iota {dimensions = array<i32: 0>} : vector<32x1xi32>
    %c16_i32 = arith.constant 16 : i32
    %c0_i32 = arith.constant 0 : i32
    %8 = arith.cmpi eq, %c16_i32, %c0_i32 : i32
    %c1_i32 = arith.constant 1 : i32
    %9 = arith.select %8, %c1_i32, %c16_i32 : i32
    %10 = vector.broadcast %9 : i32 to vector<32x1xi32>
    %11 = arith.remsi %7, %10 : vector<32x1xi32>
    %c0_i32_2 = arith.constant 0 : i32
    %12 = vector.broadcast %c0_i32_2 : i32 to vector<32x1xi32>
    %13 = arith.cmpi ne, %11, %12 : vector<32x1xi32>
    %c0_i32_3 = arith.constant 0 : i32
    %14 = vector.broadcast %c0_i32_3 : i32 to vector<32x1xi32>
    %15 = arith.cmpi slt, %11, %14 : vector<32x1xi32>
    %c0_i32_4 = arith.constant 0 : i32
    %16 = arith.cmpi slt, %9, %c0_i32_4 : i32
    %17 = vector.broadcast %16 : i1 to vector<32x1xi1>
    %18 = vector.broadcast %17 : vector<32x1xi1> to vector<32x1xi1>
    %19 = arith.xori %15, %18 : vector<32x1xi1>
    %20 = arith.andi %19, %13 : vector<32x1xi1>
    %21 = vector.broadcast %9 : i32 to vector<32x1xi32>
    %22 = arith.addi %11, %21 : vector<32x1xi32>
    %23 = arith.select %20, %22, %11 : vector<32x1xi1>, vector<32x1xi32>
    %c0_i32_5 = arith.constant 0 : i32
    %24 = vector.broadcast %c0_i32_5 : i32 to vector<32x1xi32>
    %25 = arith.cmpi eq, %23, %24 : vector<32x1xi32>
    %cst_6 = arith.constant 0.000000e+00 : f32
    %26 = vector.shape_cast %25 : vector<32x1xi1> to vector<32x1xi1>
    %27 = vector.broadcast %26 : vector<32x1xi1> to vector<32x3xi1>
    %28 = vector.broadcast %cst_6 : f32 to vector<32x3xf32>
    %29 = arith.select %27, %28, %4 : vector<32x3xi1>, vector<32x3xf32>
    %c15_i32 = arith.constant 15 : i32
    %30 = vector.broadcast %c15_i32 : i32 to vector<32x1xi32>
    %31 = arith.cmpi eq, %23, %30 : vector<32x1xi32>
    %cst_7 = arith.constant 0.000000e+00 : f32
    %32 = vector.shape_cast %31 : vector<32x1xi1> to vector<32x1xi1>
    %33 = vector.broadcast %32 : vector<32x1xi1> to vector<32x3xi1>
    %34 = vector.broadcast %cst_7 : f32 to vector<32x3xf32>
    %35 = arith.select %33, %34, %6 : vector<32x3xi1>, vector<32x3xf32>
    %36 = arith.truncf %29 : vector<32x3xf32> to vector<32x3xbf16>
    %c0_8 = arith.constant 0 : index
    %c0_9 = arith.constant 0 : index
    %c0_10 = arith.constant 0 : index
    %37 = vector.load %arg2[%c0_8, %c0_9, %c0_10] : memref<3x3x64xbf16, #tpu.memory_space<vmem>>, vector<1x3x64xbf16>
    %38 = vector.shape_cast %37 : vector<1x3x64xbf16> to vector<3x64xbf16>
    %cst_11 = arith.constant dense<0.000000e+00> : vector<32x64xf32>
    %39 = tpu.matmul %36, %38, %cst_11 {dimension_numbers = #tpu.dot_dimension_numbers<[1], [0], [0], [1], [0, 0, 1, 1], [], []>} : vector<32x3xbf16>, vector<3x64xbf16>, vector<32x64xf32> -> vector<32x64xf32>
    %40 = arith.truncf %1 : vector<32x3xf32> to vector<32x3xbf16>
    %c1 = arith.constant 1 : index
    %c0_12 = arith.constant 0 : index
    %c0_13 = arith.constant 0 : index
    %41 = vector.load %arg2[%c1, %c0_12, %c0_13] : memref<3x3x64xbf16, #tpu.memory_space<vmem>>, vector<1x3x64xbf16>
    %42 = vector.shape_cast %41 : vector<1x3x64xbf16> to vector<3x64xbf16>
    %cst_14 = arith.constant dense<0.000000e+00> : vector<32x64xf32>
    %43 = tpu.matmul %40, %42, %cst_14 {dimension_numbers = #tpu.dot_dimension_numbers<[1], [0], [0], [1], [0, 0, 1, 1], [], []>} : vector<32x3xbf16>, vector<3x64xbf16>, vector<32x64xf32> -> vector<32x64xf32>
    %44 = arith.addf %39, %43 : vector<32x64xf32>
    %45 = arith.truncf %35 : vector<32x3xf32> to vector<32x3xbf16>
    %c2 = arith.constant 2 : index
    %c0_15 = arith.constant 0 : index
    %c0_16 = arith.constant 0 : index
    %46 = vector.load %arg2[%c2, %c0_15, %c0_16] : memref<3x3x64xbf16, #tpu.memory_space<vmem>>, vector<1x3x64xbf16>
    %47 = vector.shape_cast %46 : vector<1x3x64xbf16> to vector<3x64xbf16>
    %cst_17 = arith.constant dense<0.000000e+00> : vector<32x64xf32>
    %48 = tpu.matmul %45, %47, %cst_17 {dimension_numbers = #tpu.dot_dimension_numbers<[1], [0], [0], [1], [0, 0, 1, 1], [], []>} : vector<32x3xbf16>, vector<3x64xbf16>, vector<32x64xf32> -> vector<32x64xf32>
    %49 = arith.addf %44, %48 : vector<32x64xf32>
    %c0_18 = arith.constant 0 : index
    %c0_19 = arith.constant 0 : index
    %50 = vector.load %arg3[%c0_18, %c0_19] : memref<1x64xf32, #tpu.memory_space<vmem>>, vector<1x64xf32>
    %51 = vector.broadcast %50 : vector<1x64xf32> to vector<32x64xf32>
    %52 = arith.mulf %49, %51 : vector<32x64xf32>
    %c0_20 = arith.constant 0 : index
    %c0_21 = arith.constant 0 : index
    %53 = vector.load %arg4[%c0_20, %c0_21] : memref<1x64xf32, #tpu.memory_space<vmem>>, vector<1x64xf32>
    %54 = vector.broadcast %53 : vector<1x64xf32> to vector<32x64xf32>
    %55 = arith.addf %52, %54 : vector<32x64xf32>
    %cst_22 = arith.constant 0.000000e+00 : f32
    %56 = vector.broadcast %cst_22 : f32 to vector<32x64xf32>
    %57 = arith.maximumf %55, %56 : vector<32x64xf32>
    %58 = vector.shape_cast %57 : vector<32x64xf32> to vector<2x16x64xf32>
    %59 = vector.shape_cast %58 : vector<2x16x64xf32> to vector<16x2x64xf32>
    %cst_23 = arith.constant dense<0xFF800000> : vector<16x64xf32>
    %60 = vector.multi_reduction <maximumf>, %59, %cst_23 [1] : vector<16x2x64xf32> to vector<16x64xf32>
    %61 = vector.shape_cast %60 : vector<16x64xf32> to vector<2x8x64xf32>
    %62 = vector.shape_cast %61 : vector<2x8x64xf32> to vector<16x64xf32>
    %cst_24 = arith.constant 0.000000e+00 : f32
    %63 = vector.broadcast %cst_24 : f32 to vector<1x64xf32>
    %64 = vector.extract_strided_slice %62 {offsets = [0, 0], sizes = [15, 64], strides = [1, 1]} : vector<16x64xf32> to vector<15x64xf32>
    %65 = tpu.concatenate %63, %64 in 0 : vector<1x64xf32>, vector<15x64xf32> -> vector<16x64xf32>
    %66 = vector.extract_strided_slice %62 {offsets = [1, 0], sizes = [15, 64], strides = [1, 1]} : vector<16x64xf32> to vector<15x64xf32>
    %67 = tpu.concatenate %66, %63 in 0 : vector<15x64xf32>, vector<1x64xf32> -> vector<16x64xf32>
    %68 = tpu.iota {dimensions = array<i32: 0>} : vector<16x1xi32>
    %c8_i32 = arith.constant 8 : i32
    %c0_i32_25 = arith.constant 0 : i32
    %69 = arith.cmpi eq, %c8_i32, %c0_i32_25 : i32
    %c1_i32_26 = arith.constant 1 : i32
    %70 = arith.select %69, %c1_i32_26, %c8_i32 : i32
    %71 = vector.broadcast %70 : i32 to vector<16x1xi32>
    %72 = arith.remsi %68, %71 : vector<16x1xi32>
    %c0_i32_27 = arith.constant 0 : i32
    %73 = vector.broadcast %c0_i32_27 : i32 to vector<16x1xi32>
    %74 = arith.cmpi ne, %72, %73 : vector<16x1xi32>
    %c0_i32_28 = arith.constant 0 : i32
    %75 = vector.broadcast %c0_i32_28 : i32 to vector<16x1xi32>
    %76 = arith.cmpi slt, %72, %75 : vector<16x1xi32>
    %c0_i32_29 = arith.constant 0 : i32
    %77 = arith.cmpi slt, %70, %c0_i32_29 : i32
    %78 = vector.broadcast %77 : i1 to vector<16x1xi1>
    %79 = vector.broadcast %78 : vector<16x1xi1> to vector<16x1xi1>
    %80 = arith.xori %76, %79 : vector<16x1xi1>
    %81 = arith.andi %80, %74 : vector<16x1xi1>
    %82 = vector.broadcast %70 : i32 to vector<16x1xi32>
    %83 = arith.addi %72, %82 : vector<16x1xi32>
    %84 = arith.select %81, %83, %72 : vector<16x1xi1>, vector<16x1xi32>
    %c0_i32_30 = arith.constant 0 : i32
    %85 = vector.broadcast %c0_i32_30 : i32 to vector<16x1xi32>
    %86 = arith.cmpi eq, %84, %85 : vector<16x1xi32>
    %cst_31 = arith.constant 0.000000e+00 : f32
    %87 = vector.shape_cast %86 : vector<16x1xi1> to vector<16x1xi1>
    %88 = vector.broadcast %87 : vector<16x1xi1> to vector<16x64xi1>
    %89 = vector.broadcast %cst_31 : f32 to vector<16x64xf32>
    %90 = arith.select %88, %89, %65 : vector<16x64xi1>, vector<16x64xf32>
    %c7_i32 = arith.constant 7 : i32
    %91 = vector.broadcast %c7_i32 : i32 to vector<16x1xi32>
    %92 = arith.cmpi eq, %84, %91 : vector<16x1xi32>
    %cst_32 = arith.constant 0.000000e+00 : f32
    %93 = vector.shape_cast %92 : vector<16x1xi1> to vector<16x1xi1>
    %94 = vector.broadcast %93 : vector<16x1xi1> to vector<16x64xi1>
    %95 = vector.broadcast %cst_32 : f32 to vector<16x64xf32>
    %96 = arith.select %94, %95, %67 : vector<16x64xi1>, vector<16x64xf32>
    %97 = arith.truncf %90 : vector<16x64xf32> to vector<16x64xbf16>
    %c0_33 = arith.constant 0 : index
    %c0_34 = arith.constant 0 : index
    %c0_35 = arith.constant 0 : index
    %98 = vector.load %arg5[%c0_33, %c0_34, %c0_35] : memref<3x64x128xbf16, #tpu.memory_space<vmem>>, vector<1x64x128xbf16>
    %99 = vector.shape_cast %98 : vector<1x64x128xbf16> to vector<64x128xbf16>
    %cst_36 = arith.constant dense<0.000000e+00> : vector<16x128xf32>
    %100 = tpu.matmul %97, %99, %cst_36 {dimension_numbers = #tpu.dot_dimension_numbers<[1], [0], [0], [1], [0, 0, 1, 1], [], []>} : vector<16x64xbf16>, vector<64x128xbf16>, vector<16x128xf32> -> vector<16x128xf32>
    %101 = arith.truncf %62 : vector<16x64xf32> to vector<16x64xbf16>
    %c1_37 = arith.constant 1 : index
    %c0_38 = arith.constant 0 : index
    %c0_39 = arith.constant 0 : index
    %102 = vector.load %arg5[%c1_37, %c0_38, %c0_39] : memref<3x64x128xbf16, #tpu.memory_space<vmem>>, vector<1x64x128xbf16>
    %103 = vector.shape_cast %102 : vector<1x64x128xbf16> to vector<64x128xbf16>
    %cst_40 = arith.constant dense<0.000000e+00> : vector<16x128xf32>
    %104 = tpu.matmul %101, %103, %cst_40 {dimension_numbers = #tpu.dot_dimension_numbers<[1], [0], [0], [1], [0, 0, 1, 1], [], []>} : vector<16x64xbf16>, vector<64x128xbf16>, vector<16x128xf32> -> vector<16x128xf32>
    %105 = arith.addf %100, %104 : vector<16x128xf32>
    %106 = arith.truncf %96 : vector<16x64xf32> to vector<16x64xbf16>
    %c2_41 = arith.constant 2 : index
    %c0_42 = arith.constant 0 : index
    %c0_43 = arith.constant 0 : index
    %107 = vector.load %arg5[%c2_41, %c0_42, %c0_43] : memref<3x64x128xbf16, #tpu.memory_space<vmem>>, vector<1x64x128xbf16>
    %108 = vector.shape_cast %107 : vector<1x64x128xbf16> to vector<64x128xbf16>
    %cst_44 = arith.constant dense<0.000000e+00> : vector<16x128xf32>
    %109 = tpu.matmul %106, %108, %cst_44 {dimension_numbers = #tpu.dot_dimension_numbers<[1], [0], [0], [1], [0, 0, 1, 1], [], []>} : vector<16x64xbf16>, vector<64x128xbf16>, vector<16x128xf32> -> vector<16x128xf32>
    %110 = arith.addf %105, %109 : vector<16x128xf32>
    %c0_45 = arith.constant 0 : index
    %c0_46 = arith.constant 0 : index
    %111 = vector.load %arg6[%c0_45, %c0_46] : memref<1x128xf32, #tpu.memory_space<vmem>>, vector<1x128xf32>
    %112 = vector.broadcast %111 : vector<1x128xf32> to vector<16x128xf32>
    %113 = arith.mulf %110, %112 : vector<16x128xf32>
    %c0_47 = arith.constant 0 : index
    %c0_48 = arith.constant 0 : index
    %114 = vector.load %arg7[%c0_47, %c0_48] : memref<1x128xf32, #tpu.memory_space<vmem>>, vector<1x128xf32>
    %115 = vector.broadcast %114 : vector<1x128xf32> to vector<16x128xf32>
    %116 = arith.addf %113, %115 : vector<16x128xf32>
    %cst_49 = arith.constant 0.000000e+00 : f32
    %117 = vector.broadcast %cst_49 : f32 to vector<16x128xf32>
    %118 = arith.maximumf %116, %117 : vector<16x128xf32>
    %119 = vector.shape_cast %118 : vector<16x128xf32> to vector<2x8x128xf32>
    %120 = vector.shape_cast %119 : vector<2x8x128xf32> to vector<8x2x128xf32>
    %cst_50 = arith.constant dense<0xFF800000> : vector<8x128xf32>
    %121 = vector.multi_reduction <maximumf>, %120, %cst_50 [1] : vector<8x2x128xf32> to vector<8x128xf32>
    %122 = vector.shape_cast %121 : vector<8x128xf32> to vector<2x4x128xf32>
    %123 = vector.shape_cast %122 : vector<2x4x128xf32> to vector<8x128xf32>
    %cst_51 = arith.constant 0.000000e+00 : f32
    %124 = vector.broadcast %cst_51 : f32 to vector<1x128xf32>
    %125 = vector.extract_strided_slice %123 {offsets = [0, 0], sizes = [7, 128], strides = [1, 1]} : vector<8x128xf32> to vector<7x128xf32>
    %126 = tpu.concatenate %124, %125 in 0 : vector<1x128xf32>, vector<7x128xf32> -> vector<8x128xf32>
    %127 = vector.extract_strided_slice %123 {offsets = [1, 0], sizes = [7, 128], strides = [1, 1]} : vector<8x128xf32> to vector<7x128xf32>
    %128 = tpu.concatenate %127, %124 in 0 : vector<7x128xf32>, vector<1x128xf32> -> vector<8x128xf32>
    %129 = tpu.iota {dimensions = array<i32: 0>} : vector<8x1xi32>
    %c4_i32 = arith.constant 4 : i32
    %c0_i32_52 = arith.constant 0 : i32
    %130 = arith.cmpi eq, %c4_i32, %c0_i32_52 : i32
    %c1_i32_53 = arith.constant 1 : i32
    %131 = arith.select %130, %c1_i32_53, %c4_i32 : i32
    %132 = vector.broadcast %131 : i32 to vector<8x1xi32>
    %133 = arith.remsi %129, %132 : vector<8x1xi32>
    %c0_i32_54 = arith.constant 0 : i32
    %134 = vector.broadcast %c0_i32_54 : i32 to vector<8x1xi32>
    %135 = arith.cmpi ne, %133, %134 : vector<8x1xi32>
    %c0_i32_55 = arith.constant 0 : i32
    %136 = vector.broadcast %c0_i32_55 : i32 to vector<8x1xi32>
    %137 = arith.cmpi slt, %133, %136 : vector<8x1xi32>
    %c0_i32_56 = arith.constant 0 : i32
    %138 = arith.cmpi slt, %131, %c0_i32_56 : i32
    %139 = vector.broadcast %138 : i1 to vector<8x1xi1>
    %140 = vector.broadcast %139 : vector<8x1xi1> to vector<8x1xi1>
    %141 = arith.xori %137, %140 : vector<8x1xi1>
    %142 = arith.andi %141, %135 : vector<8x1xi1>
    %143 = vector.broadcast %131 : i32 to vector<8x1xi32>
    %144 = arith.addi %133, %143 : vector<8x1xi32>
    %145 = arith.select %142, %144, %133 : vector<8x1xi1>, vector<8x1xi32>
    %c0_i32_57 = arith.constant 0 : i32
    %146 = vector.broadcast %c0_i32_57 : i32 to vector<8x1xi32>
    %147 = arith.cmpi eq, %145, %146 : vector<8x1xi32>
    %cst_58 = arith.constant 0.000000e+00 : f32
    %148 = vector.shape_cast %147 : vector<8x1xi1> to vector<8x1xi1>
    %149 = vector.broadcast %148 : vector<8x1xi1> to vector<8x128xi1>
    %150 = vector.broadcast %cst_58 : f32 to vector<8x128xf32>
    %151 = arith.select %149, %150, %126 : vector<8x128xi1>, vector<8x128xf32>
    %c3_i32 = arith.constant 3 : i32
    %152 = vector.broadcast %c3_i32 : i32 to vector<8x1xi32>
    %153 = arith.cmpi eq, %145, %152 : vector<8x1xi32>
    %cst_59 = arith.constant 0.000000e+00 : f32
    %154 = vector.shape_cast %153 : vector<8x1xi1> to vector<8x1xi1>
    %155 = vector.broadcast %154 : vector<8x1xi1> to vector<8x128xi1>
    %156 = vector.broadcast %cst_59 : f32 to vector<8x128xf32>
    %157 = arith.select %155, %156, %128 : vector<8x128xi1>, vector<8x128xf32>
    %158 = arith.truncf %151 : vector<8x128xf32> to vector<8x128xbf16>
    %c0_60 = arith.constant 0 : index
    %c0_61 = arith.constant 0 : index
    %c0_62 = arith.constant 0 : index
    %159 = vector.load %arg8[%c0_60, %c0_61, %c0_62] : memref<3x128x256xbf16, #tpu.memory_space<vmem>>, vector<1x128x256xbf16>
    %160 = vector.shape_cast %159 : vector<1x128x256xbf16> to vector<128x256xbf16>
    %cst_63 = arith.constant dense<0.000000e+00> : vector<8x256xf32>
    %161 = tpu.matmul %158, %160, %cst_63 {dimension_numbers = #tpu.dot_dimension_numbers<[1], [0], [0], [1], [0, 0, 1, 1], [], []>} : vector<8x128xbf16>, vector<128x256xbf16>, vector<8x256xf32> -> vector<8x256xf32>
    %162 = arith.truncf %123 : vector<8x128xf32> to vector<8x128xbf16>
    %c1_64 = arith.constant 1 : index
    %c0_65 = arith.constant 0 : index
    %c0_66 = arith.constant 0 : index
    %163 = vector.load %arg8[%c1_64, %c0_65, %c0_66] : memref<3x128x256xbf16, #tpu.memory_space<vmem>>, vector<1x128x256xbf16>
    %164 = vector.shape_cast %163 : vector<1x128x256xbf16> to vector<128x256xbf16>
    %cst_67 = arith.constant dense<0.000000e+00> : vector<8x256xf32>
    %165 = tpu.matmul %162, %164, %cst_67 {dimension_numbers = #tpu.dot_dimension_numbers<[1], [0], [0], [1], [0, 0, 1, 1], [], []>} : vector<8x128xbf16>, vector<128x256xbf16>, vector<8x256xf32> -> vector<8x256xf32>
    %166 = arith.addf %161, %165 : vector<8x256xf32>
    %167 = arith.truncf %157 : vector<8x128xf32> to vector<8x128xbf16>
    %c2_68 = arith.constant 2 : index
    %c0_69 = arith.constant 0 : index
    %c0_70 = arith.constant 0 : index
    %168 = vector.load %arg8[%c2_68, %c0_69, %c0_70] : memref<3x128x256xbf16, #tpu.memory_space<vmem>>, vector<1x128x256xbf16>
    %169 = vector.shape_cast %168 : vector<1x128x256xbf16> to vector<128x256xbf16>
    %cst_71 = arith.constant dense<0.000000e+00> : vector<8x256xf32>
    %170 = tpu.matmul %167, %169, %cst_71 {dimension_numbers = #tpu.dot_dimension_numbers<[1], [0], [0], [1], [0, 0, 1, 1], [], []>} : vector<8x128xbf16>, vector<128x256xbf16>, vector<8x256xf32> -> vector<8x256xf32>
    %171 = arith.addf %166, %170 : vector<8x256xf32>
    %c0_72 = arith.constant 0 : index
    %c0_73 = arith.constant 0 : index
    %172 = vector.load %arg9[%c0_72, %c0_73] : memref<1x256xf32, #tpu.memory_space<vmem>>, vector<1x256xf32>
    %173 = vector.broadcast %172 : vector<1x256xf32> to vector<8x256xf32>
    %174 = arith.mulf %171, %173 : vector<8x256xf32>
    %c0_74 = arith.constant 0 : index
    %c0_75 = arith.constant 0 : index
    %175 = vector.load %arg10[%c0_74, %c0_75] : memref<1x256xf32, #tpu.memory_space<vmem>>, vector<1x256xf32>
    %176 = vector.broadcast %175 : vector<1x256xf32> to vector<8x256xf32>
    %177 = arith.addf %174, %176 : vector<8x256xf32>
    %cst_76 = arith.constant 0.000000e+00 : f32
    %178 = vector.broadcast %cst_76 : f32 to vector<8x256xf32>
    %179 = arith.maximumf %177, %178 : vector<8x256xf32>
    %180 = vector.shape_cast %179 : vector<8x256xf32> to vector<2x4x256xf32>
    %181 = vector.shape_cast %180 : vector<2x4x256xf32> to vector<4x2x256xf32>
    %cst_77 = arith.constant dense<0xFF800000> : vector<4x256xf32>
    %182 = vector.multi_reduction <maximumf>, %181, %cst_77 [1] : vector<4x2x256xf32> to vector<4x256xf32>
    %183 = vector.shape_cast %182 : vector<4x256xf32> to vector<2x2x256xf32>
    %184 = vector.extract_strided_slice %183 {offsets = [0, 0, 0], sizes = [2, 1, 256], strides = [1, 1, 1]} : vector<2x2x256xf32> to vector<2x1x256xf32>
    %185 = vector.shape_cast %184 : vector<2x1x256xf32> to vector<2x256xf32>
    %186 = vector.extract_strided_slice %183 {offsets = [0, 1, 0], sizes = [2, 1, 256], strides = [1, 1, 1]} : vector<2x2x256xf32> to vector<2x1x256xf32>
    %187 = vector.shape_cast %186 : vector<2x1x256xf32> to vector<2x256xf32>
    %188 = tpu.concatenate %185, %187 in 1 : vector<2x256xf32>, vector<2x256xf32> -> vector<2x512xf32>
    %189 = arith.truncf %188 : vector<2x512xf32> to vector<2x512xbf16>
    %c0_78 = arith.constant 0 : index
    %c0_79 = arith.constant 0 : index
    %190 = vector.load %arg11[%c0_78, %c0_79] : memref<512x512xbf16, #tpu.memory_space<vmem>>, vector<512x512xbf16>
    %cst_80 = arith.constant dense<0.000000e+00> : vector<2x512xf32>
    %191 = tpu.matmul %189, %190, %cst_80 {dimension_numbers = #tpu.dot_dimension_numbers<[1], [0], [0], [1], [0, 0, 1, 1], [], []>} : vector<2x512xbf16>, vector<512x512xbf16>, vector<2x512xf32> -> vector<2x512xf32>
    %c0_81 = arith.constant 0 : index
    %c0_82 = arith.constant 0 : index
    %192 = vector.load %arg12[%c0_81, %c0_82] : memref<1x512xf32, #tpu.memory_space<vmem>>, vector<1x512xf32>
    %193 = vector.broadcast %192 : vector<1x512xf32> to vector<2x512xf32>
    %194 = arith.addf %191, %193 : vector<2x512xf32>
    %195 = arith.truncf %194 : vector<2x512xf32> to vector<2x512xbf16>
    %c0_83 = arith.constant 0 : index
    %c0_84 = arith.constant 0 : index
    %196 = vector.load %arg13[%c0_83, %c0_84] : memref<512x6xbf16, #tpu.memory_space<vmem>>, vector<512x6xbf16>
    %cst_85 = arith.constant dense<0.000000e+00> : vector<2x6xf32>
    %197 = tpu.matmul %195, %196, %cst_85 {dimension_numbers = #tpu.dot_dimension_numbers<[1], [0], [0], [1], [0, 0, 1, 1], [], []>} : vector<2x512xbf16>, vector<512x6xbf16>, vector<2x6xf32> -> vector<2x6xf32>
    %c0_86 = arith.constant 0 : index
    %c0_87 = arith.constant 0 : index
    %198 = vector.load %arg14[%c0_86, %c0_87] : memref<1x6xf32, #tpu.memory_space<vmem>>, vector<1x6xf32>
    %199 = vector.broadcast %198 : vector<1x6xf32> to vector<2x6xf32>
    %200 = arith.addf %197, %199 : vector<2x6xf32>
    %c0_88 = arith.constant 0 : index
    %c0_89 = arith.constant 0 : index
    %201 = vector.load %arg15[%c0_88, %c0_89] : memref<2x6xf32, #tpu.memory_space<vmem>>, vector<2x6xf32>
    tpu.vector_store %arg15[%c0_88, %c0_89], %200 {strides = array<i32>} : memref<2x6xf32, #tpu.memory_space<vmem>>, vector<2x6xf32>,
    return
  }
  func.func @transform_0(%arg0: i32) -> (i32, i32, i32) {
    %c0_i32 = arith.constant 0 : i32
    %c0_i32_0 = arith.constant 0 : i32
    %c0_i32_1 = arith.constant 0 : i32
    return %arg0, %c0_i32, %c0_i32_0 : i32, i32, i32
  }
  func.func @transform_1(%arg0: i32) -> (i32, i32, i32) {
    %c0_i32 = arith.constant 0 : i32
    %c0_i32_0 = arith.constant 0 : i32
    %c0_i32_1 = arith.constant 0 : i32
    %c0_i32_2 = arith.constant 0 : i32
    return %c0_i32, %c0_i32_0, %c0_i32_1 : i32, i32, i32
  }
  func.func @transform_2(%arg0: i32) -> (i32, i32) {
    %c0_i32 = arith.constant 0 : i32
    %c0_i32_0 = arith.constant 0 : i32
    %c0_i32_1 = arith.constant 0 : i32
    return %c0_i32, %c0_i32_0 : i32, i32
  }
  func.func @transform_3(%arg0: i32) -> (i32, i32) {
    %c0_i32 = arith.constant 0 : i32
    %c0_i32_0 = arith.constant 0 : i32
    %c0_i32_1 = arith.constant 0 : i32
    return %c0_i32, %c0_i32_0 : i32, i32
  }
  func.func @transform_4(%arg0: i32) -> (i32, i32, i32) {
    %c0_i32 = arith.constant 0 : i32
    %c0_i32_0 = arith.constant 0 : i32
    %c0_i32_1 = arith.constant 0 : i32
    %c0_i32_2 = arith.constant 0 : i32
    return %c0_i32, %c0_i32_0, %c0_i32_1 : i32, i32, i32
  }
  func.func @transform_5(%arg0: i32) -> (i32, i32) {
    %c0_i32 = arith.constant 0 : i32
    %c0_i32_0 = arith.constant 0 : i32
    %c0_i32_1 = arith.constant 0 : i32
    return %c0_i32, %c0_i32_0 : i32, i32
  }
  func.func @transform_6(%arg0: i32) -> (i32, i32) {
    %c0_i32 = arith.constant 0 : i32
    %c0_i32_0 = arith.constant 0 : i32
    %c0_i32_1 = arith.constant 0 : i32
    return %c0_i32, %c0_i32_0 : i32, i32
  }
  func.func @transform_7(%arg0: i32) -> (i32, i32, i32) {
    %c0_i32 = arith.constant 0 : i32
    %c0_i32_0 = arith.constant 0 : i32
    %c0_i32_1 = arith.constant 0 : i32
    %c0_i32_2 = arith.constant 0 : i32
    return %c0_i32, %c0_i32_0, %c0_i32_1 : i32, i32, i32
  }
  func.func @transform_8(%arg0: i32) -> (i32, i32) {
    %c0_i32 = arith.constant 0 : i32
    %c0_i32_0 = arith.constant 0 : i32
    %c0_i32_1 = arith.constant 0 : i32
    return %c0_i32, %c0_i32_0 : i32, i32
  }
  func.func @transform_9(%arg0: i32) -> (i32, i32) {
    %c0_i32 = arith.constant 0 : i32
    %c0_i32_0 = arith.constant 0 : i32
    %c0_i32_1 = arith.constant 0 : i32
    return %c0_i32, %c0_i32_0 : i32, i32
  }
  func.func @transform_10(%arg0: i32) -> (i32, i32) {
    %c0_i32 = arith.constant 0 : i32
    %c0_i32_0 = arith.constant 0 : i32
    %c0_i32_1 = arith.constant 0 : i32
    return %c0_i32, %c0_i32_0 : i32, i32
  }
  func.func @transform_11(%arg0: i32) -> (i32, i32) {
    %c0_i32 = arith.constant 0 : i32
    %c0_i32_0 = arith.constant 0 : i32
    %c0_i32_1 = arith.constant 0 : i32
    return %c0_i32, %c0_i32_0 : i32, i32
  }
  func.func @transform_12(%arg0: i32) -> (i32, i32) {
    %c0_i32 = arith.constant 0 : i32
    %c0_i32_0 = arith.constant 0 : i32
    %c0_i32_1 = arith.constant 0 : i32
    return %c0_i32, %c0_i32_0 : i32, i32
  }
  func.func @transform_13(%arg0: i32) -> (i32, i32) {
    %c0_i32 = arith.constant 0 : i32
    %c0_i32_0 = arith.constant 0 : i32
    %c0_i32_1 = arith.constant 0 : i32
    return %c0_i32, %c0_i32_0 : i32, i32
  }
  func.func @transform_14(%arg0: i32) -> (i32, i32) {
    %c0_i32 = arith.constant 0 : i32
    %c0_i32_0 = arith.constant 0 : i32
    return %arg0, %c0_i32 : i32, i32
  }
}

</mosaic_0001>

<llo_original>
// kernel: tpu_custom_call.1
$region0: #{tpu_custom_call.1}
  #allocation0 [shape = 'u32[]', space=smem, size = 0x4, offset = 0x4, fixed_abs, tag = 'smem constant byte address 0x4 - core index']
  #allocation1 [shape = 'u32[144,128]{1,0:T(1,128)}', space=vmem, size = 0x12000, scoped, tag = 'internal scratch']
  %s0 = inlined_call_operand.vmem [shape: f32[2,16,3], index: 0, kind: input, shape index: {}]
  %s1 = inlined_call_operand.vmem [shape: bf16[3,3,64], index: 1, kind: input, shape index: {}]
  %s2 = inlined_call_operand.vmem [shape: f32[1,64], index: 2, kind: input, shape index: {}]
  %s3 = inlined_call_operand.vmem [shape: f32[1,64], index: 3, kind: input, shape index: {}]
  %s4 = inlined_call_operand.vmem [shape: bf16[3,64,128], index: 4, kind: input, shape index: {}]
  %s5 = inlined_call_operand.vmem [shape: f32[1,128], index: 5, kind: input, shape index: {}]
  %s6 = inlined_call_operand.vmem [shape: f32[1,128], index: 6, kind: input, shape index: {}]
  %s7 = inlined_call_operand.hbm [shape: bf16[3,128,256], index: 7, kind: input, shape index: {}]
  %s8 = inlined_call_operand.vmem [shape: f32[1,256], index: 8, kind: input, shape index: {}]
  %s9 = inlined_call_operand.vmem [shape: f32[1,256], index: 9, kind: input, shape index: {}]
  %s10 = inlined_call_operand.hbm [shape: bf16[512,512], index: 10, kind: input, shape index: {}]
  %s11 = inlined_call_operand.vmem [shape: f32[1,512], index: 11, kind: input, shape index: {}]
  %s12 = inlined_call_operand.vmem [shape: bf16[512,6], index: 12, kind: input, shape index: {}]
  %s13 = inlined_call_operand.vmem [shape: f32[1,6], index: 13, kind: input, shape index: {}]
  %s14 = inlined_call_operand.hbm [shape: f32[2,6], index: 14, kind: output, shape index: {}]
  %s15 = sld [smem:[#allocation0]]
  $region74: #{tpu_custom_call.1} parent=0
    _
  %s17 = ssub.s32 1, %s15
  %s18 = scalar_select 0, %s17, %s15
  $region1: #{tpu_custom_call.1} parent=0
    #allocation2 [shape = 'u8[196608]{0}', space=vmem, size = 0x30000, scoped, tag = 'input window, operand 7, single buffered']
    #allocation3 [shape = 's32[1]{0}', space=sflag, size = 0x4, scoped, tag = 'scoped memory for tpu_custom_call.1']
    #allocation4 [shape = 's32[1]{0}', space=sflag, size = 0x4, scoped, tag = 'scoped memory for tpu_custom_call.1']
    #allocation5 [shape = 'u8[524288]{0}', space=vmem, size = 0x80000, scoped, tag = 'input window, operand 10, single buffered']
    #allocation6 [shape = 's32[1]{0}', space=sflag, size = 0x4, scoped, tag = 'scoped memory for tpu_custom_call.1']
    #allocation7 [shape = 'u8[1024]{0}', space=vmem, size = 0x400, scoped, tag = 'output window, operand 0, single buffered']
    %19 = vsyncpa [#allocation3], 0
    %20 = vsyncpa [#allocation6], 0
    %21 = vsyncpa [#allocation4], 0
    // Predicated region
    $region2: #{tpu_custom_call.1} parent=1 // pred_check
      _
    $region3: #{tpu_custom_call.1} parent=1 // pred_check_branch
      %23 = sbr.rel (0) target = $region5
    $region4: #{tpu_custom_call.1} parent=1 // pred_region
      _
    $region5: #{tpu_custom_call.1} parent=1 // pred_fallthru
      _
    // Predicated region
    $region6: #{tpu_custom_call.1} parent=1 // pred_check
      _
    $region7: #{tpu_custom_call.1} parent=1 // pred_check_branch
      %25 = sbr.rel (0) target = $region9
    $region8: #{tpu_custom_call.1} parent=1 // pred_region
      _
    $region9: #{tpu_custom_call.1} parent=1 // pred_fallthru
      _
    // Predicated region
    $region10: #{tpu_custom_call.1} parent=1 // pred_check
      _
    $region11: #{tpu_custom_call.1} parent=1 // pred_check_branch
      %27 = sbr.rel (0) target = $region13
    $region12: #{tpu_custom_call.1} parent=1 // pred_region
      _
    $region13: #{tpu_custom_call.1} parent=1 // pred_fallthru
      _
    // Predicated region
    $region14: #{tpu_custom_call.1} parent=1 // pred_check
      _
    $region15: #{tpu_custom_call.1} parent=1 // pred_check_branch
      %29 = sbr.rel (0) target = $region17
    $region16: #{tpu_custom_call.1} parent=1 // pred_region
      _
    $region17: #{tpu_custom_call.1} parent=1 // pred_fallthru
      _
    // Predicated region
    $region18: #{tpu_custom_call.1} parent=1 // pred_check
      _
    $region19: #{tpu_custom_call.1} parent=1 // pred_check_branch
      %31 = sbr.rel (0) target = $region21
    $region20: #{tpu_custom_call.1} parent=1 // pred_region
      _
    $region21: #{tpu_custom_call.1} parent=1 // pred_fallthru
      _
    // Predicated region
    $region22: #{tpu_custom_call.1} parent=1 // pred_check
      _
    $region23: #{tpu_custom_call.1} parent=1 // pred_check_branch
      %33 = sbr.rel (0) target = $region25
    $region24: #{tpu_custom_call.1} parent=1 // pred_region
      _
    $region25: #{tpu_custom_call.1} parent=1 // pred_fallthru
      _
    // Predicated region
    $region26: #{tpu_custom_call.1} parent=1 // pred_check
      _
    $region27: #{tpu_custom_call.1} parent=1 // pred_check_branch
      %35 = sbr.rel (0) target = $region29
    $region28: #{tpu_custom_call.1} parent=1 // pred_region
      _
    $region29: #{tpu_custom_call.1} parent=1 // pred_fallthru
      _
    // Predicated region
    $region30: #{tpu_custom_call.1} parent=1 // pred_check
      _
    $region31: #{tpu_custom_call.1} parent=1 // pred_check_branch
      %37 = sbr.rel (0) target = $region33
    $region32: #{tpu_custom_call.1} parent=1 // pred_region
      %s39 = ssub.s32 6144, 6144
      %40 = vsyncadd [#allocation3], %s39
      %s41 = sshll.u32 [#allocation2], 4
      %s42 = int_to_ptr.vmem [resolvable:$true] %s41
      %47 = dma.hbm_to_vmem [thread:$0]  %s7, 6144, %s42, [#allocation3], 128, 128, 8
    $region33: #{tpu_custom_call.1} parent=1 // pred_fallthru
      _
    // Predicated region
    $region34: #{tpu_custom_call.1} parent=1 // pred_check
      _
    $region35: #{tpu_custom_call.1} parent=1 // pred_check_branch
      %49 = sbr.rel (0) target = $region37
    $region36: #{tpu_custom_call.1} parent=1 // pred_region
      _
    $region37: #{tpu_custom_call.1} parent=1 // pred_fallthru
      _
    // Predicated region
    $region38: #{tpu_custom_call.1} parent=1 // pred_check
      _
    $region39: #{tpu_custom_call.1} parent=1 // pred_check_branch
      %51 = sbr.rel (0) target = $region41
    $region40: #{tpu_custom_call.1} parent=1 // pred_region
      _
    $region41: #{tpu_custom_call.1} parent=1 // pred_fallthru
      _
    // Predicated region
    $region42: #{tpu_custom_call.1} parent=1 // pred_check
      _
    $region43: #{tpu_custom_call.1} parent=1 // pred_check_branch
      %53 = sbr.rel (0) target = $region45
    $region44: #{tpu_custom_call.1} parent=1 // pred_region
      %s55 = ssub.s32 16384, 16384
      %56 = vsyncadd [#allocation6], %s55
      %s57 = sshll.u32 [#allocation5], 4
      %s58 = int_to_ptr.vmem [resolvable:$true] %s57
      %63 = dma.hbm_to_vmem [thread:$0]  %s10, 16384, %s58, [#allocation6], 256, 256, 16
    $region45: #{tpu_custom_call.1} parent=1 // pred_fallthru
      _
    // Predicated region
    $region46: #{tpu_custom_call.1} parent=1 // pred_check
      _
    $region47: #{tpu_custom_call.1} parent=1 // pred_check_branch
      %65 = sbr.rel (0) target = $region49
    $region48: #{tpu_custom_call.1} parent=1 // pred_region
      _
    $region49: #{tpu_custom_call.1} parent=1 // pred_fallthru
      _
    // Predicated region
    $region50: #{tpu_custom_call.1} parent=1 // pred_check
      _
    $region51: #{tpu_custom_call.1} parent=1 // pred_check_branch
      %67 = sbr.rel (0) target = $region53
    $region52: #{tpu_custom_call.1} parent=1 // pred_region
      _
    $region53: #{tpu_custom_call.1} parent=1 // pred_fallthru
      _
    // Predicated region
    $region54: #{tpu_custom_call.1} parent=1 // pred_check
      _
    $region55: #{tpu_custom_call.1} parent=1 // pred_check_branch
      %69 = sbr.rel (0) target = $region57
    $region56: #{tpu_custom_call.1} parent=1 // pred_region
      _
    $region57: #{tpu_custom_call.1} parent=1 // pred_fallthru
      _
    // Predicated region
    $region58: #{tpu_custom_call.1} parent=1 // pred_check
      _
    $region59: #{tpu_custom_call.1} parent=1 // pred_check_branch
      %71 = sbr.rel (0) target = $region61
    $region60: #{tpu_custom_call.1} parent=1 // pred_region
      %72 = dma.done [#allocation3], 6144
    $region61: #{tpu_custom_call.1} parent=1 // pred_fallthru
      _
    // Predicated region
    $region62: #{tpu_custom_call.1} parent=1 // pred_check
      _
    $region63: #{tpu_custom_call.1} parent=1 // pred_check_branch
      %74 = sbr.rel (0) target = $region65
    $region64: #{tpu_custom_call.1} parent=1 // pred_region
      %75 = dma.done [#allocation6], 16384
    $region65: #{tpu_custom_call.1} parent=1 // pred_fallthru
      _
    %v77 = vld [vmem:[%s0] sm:$0xff]
    %v78 = vld [vmem:[%s0 + $0x8] sm:$0xff]
    %v79 = vld [vmem:[%s0 + $0x10] sm:$0xff]
    %v80 = vld [vmem:[%s0 + $0x18] sm:$0xff]
    %vm85 = vcmask 1040384
    %v86 = vrot.slane %v77, 7
    %v87 = vrot.slane %v78, 7
    %v88 = vsel %vm85, %v86, %v87
    %v89 = vrot.slane %v79, 7
    %v90 = vsel %vm85, %v87, %v89
    %v91 = vrot.slane %v80, 7
    %v92 = vsel %vm85, %v89, %v91
    %v97 = vsel %vm85, 0.0, %v86
    %vm98 = vcmask 1046528
    %v99 = vrot.slane %v77, 1
    %v100 = vrot.slane %v78, 1
    %v101 = vsel %vm98, %v99, %v100
    %v102 = vrot.slane %v79, 1
    %v103 = vsel %vm98, %v100, %v102
    %v104 = vrot.slane %v80, 1
    %v105 = vsel %vm98, %v102, %v104
    %v110 = vsel %vm98, %v104, 0.0
    %v111 = vlaneseq
    %v112 = vshrl.u32 %v111, 7
    %v113 = vadd.s32 %v112, 8
    %v114 = vadd.s32 %v112, 16
    %v115 = vadd.s32 %v112, 24
    %vm116 = vcmp.lt.s32.totalorder %v112, 0
    %v117 = vsub.s32 0, %v112
    %v118 = vsel %vm116, %v117, %v112
    %v119 = vshrl.u32 %v118, 4
    %v120 = vand.u32 %v118, 15
    %v121 = vsub.s32 0, %v120
    %v122 = vsel %vm116, %v121, %v120
    %vm123 = vcmp.lt.s32.totalorder %v113, 0
    %v124 = vsub.s32 0, %v113
    %v125 = vsel %vm123, %v124, %v113
    %v126 = vshrl.u32 %v125, 4
    %v127 = vand.u32 %v125, 15
    %v128 = vsub.s32 0, %v127
    %v129 = vsel %vm123, %v128, %v127
    %vm130 = vcmp.lt.s32.totalorder %v114, 0
    %v131 = vsub.s32 0, %v114
    %v132 = vsel %vm130, %v131, %v114
    %v133 = vshrl.u32 %v132, 4
    %v134 = vand.u32 %v132, 15
    %v135 = vsub.s32 0, %v134
    %v136 = vsel %vm130, %v135, %v134
    %vm137 = vcmp.lt.s32.totalorder %v115, 0
    %v138 = vsub.s32 0, %v115
    %v139 = vsel %vm137, %v138, %v115
    %v140 = vshrl.u32 %v139, 4
    %v141 = vand.u32 %v139, 15
    %v142 = vsub.s32 0, %v141
    %v143 = vsel %vm137, %v142, %v141
    %vm144 = vcmp.ne.s32.totalorder %v122, 0
    %vm145 = vcmp.ne.s32.totalorder %v129, 0
    %vm146 = vcmp.ne.s32.totalorder %v136, 0
    %vm147 = vcmp.ne.s32.totalorder %v143, 0
    %vm148 = vcmp.lt.s32.totalorder %v122, 0
    %vm149 = vcmp.lt.s32.totalorder %v129, 0
    %vm150 = vcmp.lt.s32.totalorder %v136, 0
    %vm151 = vcmp.lt.s32.totalorder %v143, 0
    %vm152 = vmand %vm148, %vm144
    %vm153 = vmand %vm149, %vm145
    %vm154 = vmand %vm150, %vm146
    %vm155 = vmand %vm151, %vm147
    %v156 = vadd.s32 %v122, 16
    %v157 = vadd.s32 %v129, 16
    %v158 = vadd.s32 %v136, 16
    %v159 = vadd.s32 %v143, 16
    %v160 = vsel %vm152, %v156, %v122
    %v161 = vsel %vm153, %v157, %v129
    %v162 = vsel %vm154, %v158, %v136
    %v163 = vsel %vm155, %v159, %v143
    %vm164 = vcmp.eq.s32.totalorder %v160, 0
    %vm165 = vcmp.eq.s32.totalorder %v161, 0
    %vm166 = vcmp.eq.s32.totalorder %v162, 0
    %vm167 = vcmp.eq.s32.totalorder %v163, 0
    %v168 = vsel %vm164, 1, 0
    %v169 = vsel %vm165, 1, 0
    %v170 = vsel %vm166, 1, 0
    %v171 = vsel %vm167, 1, 0
    %vm172 = vcmp.eq.s32.totalorder %v168, 1
    %vm173 = vcmp.eq.s32.totalorder %v169, 1
    %vm174 = vcmp.eq.s32.totalorder %v170, 1
    %vm175 = vcmp.eq.s32.totalorder %v171, 1
    %v176 = vsel %vm172, 0.0, %v97
    %v177 = vsel %vm173, 0.0, %v88
    %v178 = vsel %vm174, 0.0, %v90
    %v179 = vsel %vm175, 0.0, %v92
    %vm180 = vcmp.eq.s32.totalorder %v160, 15
    %vm181 = vcmp.eq.s32.totalorder %v161, 15
    %vm182 = vcmp.eq.s32.totalorder %v162, 15
    %vm183 = vcmp.eq.s32.totalorder %v163, 15
    %v184 = vsel %vm180, 1, 0
    %v185 = vsel %vm181, 1, 0
    %v186 = vsel %vm182, 1, 0
    %v187 = vsel %vm183, 1, 0
    %vm188 = vcmp.eq.s32.totalorder %v184, 1
    %vm189 = vcmp.eq.s32.totalorder %v185, 1
    %vm190 = vcmp.eq.s32.totalorder %v186, 1
    %vm191 = vcmp.eq.s32.totalorder %v187, 1
    %v192 = vsel %vm188, 0.0, %v101
    %v193 = vsel %vm189, 0.0, %v103
    %v194 = vsel %vm190, 0.0, %v105
    %v195 = vsel %vm191, 0.0, %v110
    %v196 = vpack.c.bf16 %v177, %v176
    %v197 = vpack.c.bf16 %v179, %v178
    %v198 = vld [vmem:[%s1] sm:$0x3]
    %v199 = vpack.c.bf16 %v78, %v77
    %v200 = vpack.c.bf16 %v80, %v79
    %s201 = scalar_lea.vmem %s1, 2
    %v202 = vld [vmem:[%s201] sm:$0x3]
    %vm203 = vcmask 23552
    %v205 = vsel %vm203, %v199, 0
    %v208 = vsel %vm203, %v200, 0
    %vm210 = vcmask 1041408
    %v211 = vsel %vm85, 4294967295, 65535
    %v212 = vsel %vm210, %v211, 0
    %v214 = vand.u32 %v202, %v212
    %216 = vmatprep.subr.bf16.mxu0 0
    %217 = vmatpush1.bf16.msra.mxu0 0
    %218 = vmatprep.subr.bf16.mxu0 0
    %219 = vmatpush1.bf16.msra.mxu0 0
    %220 = vmatprep.subr.bf16.mxu0 0
    %221 = vmatpush1.bf16.msra.mxu0 0
    %222 = vmatprep.subr.bf16.mxu0 0
    %223 = vmatpush1.bf16.msra.mxu0 0
    %224 = vmatprep.subr.bf16.mxu0 0
    %225 = vmatpush1.bf16.msra.mxu0 0
    %226 = vmatprep.subr.bf16.mxu0 0
    %227 = vmatpush1.bf16.msra.mxu0 0
    %228 = vmatprep.subr.bf16.mxu0 0
    %229 = vmatpush1.bf16.msra.mxu0 0
    %230 = vmatprep.subr.bf16.mxu0 0
    %231 = vmatpush1.bf16.msra.mxu0 %v214
    %232 = vmatprep.subr.bf16.mxu0 0
    %233 = vmatpush2.bf16.msra.mxu0 0
    %234 = vmatprep.subr.bf16.mxu0 0
    %235 = vmatpush2.bf16.msra.mxu0 0
    %236 = vmatprep.subr.bf16.mxu0 0
    %237 = vmatpush2.bf16.msra.mxu0 0
    %238 = vmatprep.subr.bf16.mxu0 0
    %239 = vmatpush2.bf16.msra.mxu0 0
    %240 = vmatprep.subr.bf16.mxu0 0
    %241 = vmatpush2.bf16.msra.mxu0 0
    %242 = vmatprep.subr.bf16.mxu0 0
    %243 = vmatpush2.bf16.msra.mxu0 0
    %244 = vmatprep.subr.bf16.mxu0 0
    %245 = vmatpush2.bf16.msra.mxu0 0
    %246 = vmatprep.subr.bf16.mxu0 0
    %247 = vmatpush2.bf16.msra.mxu0 0
    %248 = vmatprep.mubr.bf16.mxu0 0
    %249 = vmatmul.mubr.bf16.gmra.mxu0 %v205
    %v250 = vpop.f32.mrf.mxu0
    %v251 = vadd.f32 0.0, %v250
    %v252 = vpop.f32.mrf.mxu0
    %v253 = vpop.f32.mrf.mxu0
    %v254 = vadd.f32 0.0, %v253
    %v255 = vpop.f32.mrf.mxu0
    %256 = vmatprep.mubr.bf16.mxu0 0
    %257 = vmatmul.mubr.bf16.gmra.mxu0 %v208
    %v258 = vpop.f32.mrf.mxu0
    %v259 = vadd.f32 0.0, %v258
    %v260 = vpop.f32.mrf.mxu0
    %v261 = vpop.f32.mrf.mxu0
    %v262 = vadd.f32 0.0, %v261
    %v263 = vpop.f32.mrf.mxu0
    %264 = vdwg.mxu0
    %v266 = vsel %vm203, %v196, 0
    %v269 = vsel %vm203, %v197, 0
    %v272 = vand.u32 %v198, %v212
    %274 = vmatprep.subr.bf16.mxu0 0
    %275 = vmatpush1.bf16.msra.mxu0 0
    %276 = vmatprep.subr.bf16.mxu0 0
    %277 = vmatpush1.bf16.msra.mxu0 0
    %278 = vmatprep.subr.bf16.mxu0 0
    %279 = vmatpush1.bf16.msra.mxu0 0
    %280 = vmatprep.subr.bf16.mxu0 0
    %281 = vmatpush1.bf16.msra.mxu0 0
    %282 = vmatprep.subr.bf16.mxu0 0
    %283 = vmatpush1.bf16.msra.mxu0 0
    %284 = vmatprep.subr.bf16.mxu0 0
    %285 = vmatpush1.bf16.msra.mxu0 0
    %286 = vmatprep.subr.bf16.mxu0 0
    %287 = vmatpush1.bf16.msra.mxu0 0
    %288 = vmatprep.subr.bf16.mxu0 0
    %289 = vmatpush1.bf16.msra.mxu0 %v272
    %290 = vmatprep.subr.bf16.mxu0 0
    %291 = vmatpush2.bf16.msra.mxu0 0
    %292 = vmatprep.subr.bf16.mxu0 0
    %293 = vmatpush2.bf16.msra.mxu0 0
    %294 = vmatprep.subr.bf16.mxu0 0
    %295 = vmatpush2.bf16.msra.mxu0 0
    %296 = vmatprep.subr.bf16.mxu0 0
    %297 = vmatpush2.bf16.msra.mxu0 0
    %298 = vmatprep.subr.bf16.mxu0 0
    %299 = vmatpush2.bf16.msra.mxu0 0
    %300 = vmatprep.subr.bf16.mxu0 0
    %301 = vmatpush2.bf16.msra.mxu0 0
    %302 = vmatprep.subr.bf16.mxu0 0
    %303 = vmatpush2.bf16.msra.mxu0 0
    %304 = vmatprep.subr.bf16.mxu0 0
    %305 = vmatpush2.bf16.msra.mxu0 0
    %306 = vmatprep.mubr.bf16.mxu0 0
    %307 = vmatmul.mubr.bf16.gmra.mxu0 %v266
    %v308 = vpop.f32.mrf.mxu0
    %v309 = vadd.f32 %v251, %v308
    %v310 = vpop.f32.mrf.mxu0
    %v311 = vpop.f32.mrf.mxu0
    %v312 = vadd.f32 %v254, %v311
    %v313 = vpop.f32.mrf.mxu0
    %314 = vmatprep.mubr.bf16.mxu0 0
    %315 = vmatmul.mubr.bf16.gmra.mxu0 %v269
    %v316 = vpop.f32.mrf.mxu0
    %v317 = vadd.f32 %v259, %v316
    %v318 = vpop.f32.mrf.mxu0
    %v319 = vpop.f32.mrf.mxu0
    %v320 = vadd.f32 %v262, %v319
    %v321 = vpop.f32.mrf.mxu0
    %322 = vdwg.mxu0
    %v323 = vpack.c.bf16 %v193, %v192
    %v324 = vpack.c.bf16 %v195, %v194
    %s325 = scalar_lea.vmem %s1, 4
    %v326 = vld [vmem:[%s325] sm:$0x3]
    %v328 = vsel %vm203, %v323, 0
    %v331 = vsel %vm203, %v324, 0
    %v334 = vand.u32 %v326, %v212
    %336 = vmatprep.subr.bf16.mxu0 0
    %337 = vmatpush1.bf16.msra.mxu0 0
    %338 = vmatprep.subr.bf16.mxu0 0
    %339 = vmatpush1.bf16.msra.mxu0 0
    %340 = vmatprep.subr.bf16.mxu0 0
    %341 = vmatpush1.bf16.msra.mxu0 0
    %342 = vmatprep.subr.bf16.mxu0 0
    %343 = vmatpush1.bf16.msra.mxu0 0
    %344 = vmatprep.subr.bf16.mxu0 0
    %345 = vmatpush1.bf16.msra.mxu0 0
    %346 = vmatprep.subr.bf16.mxu0 0
    %347 = vmatpush1.bf16.msra.mxu0 0
    %348 = vmatprep.subr.bf16.mxu0 0
    %349 = vmatpush1.bf16.msra.mxu0 0
    %350 = vmatprep.subr.bf16.mxu0 0
    %351 = vmatpush1.bf16.msra.mxu0 %v334
    %352 = vmatprep.subr.bf16.mxu0 0
    %353 = vmatpush2.bf16.msra.mxu0 0
    %354 = vmatprep.subr.bf16.mxu0 0
    %355 = vmatpush2.bf16.msra.mxu0 0
    %356 = vmatprep.subr.bf16.mxu0 0
    %357 = vmatpush2.bf16.msra.mxu0 0
    %358 = vmatprep.subr.bf16.mxu0 0
    %359 = vmatpush2.bf16.msra.mxu0 0
    %360 = vmatprep.subr.bf16.mxu0 0
    %361 = vmatpush2.bf16.msra.mxu0 0
    %362 = vmatprep.subr.bf16.mxu0 0
    %363 = vmatpush2.bf16.msra.mxu0 0
    %364 = vmatprep.subr.bf16.mxu0 0
    %365 = vmatpush2.bf16.msra.mxu0 0
    %366 = vmatprep.subr.bf16.mxu0 0
    %367 = vmatpush2.bf16.msra.mxu0 0
    %368 = vmatprep.mubr.bf16.mxu0 0
    %369 = vmatmul.mubr.bf16.gmra.mxu0 %v328
    %v370 = vpop.f32.mrf.mxu0
    %v371 = vadd.f32 0.0, %v370
    %v372 = vpop.f32.mrf.mxu0
    %v373 = vpop.f32.mrf.mxu0
    %v374 = vadd.f32 0.0, %v373
    %v375 = vpop.f32.mrf.mxu0
    %376 = vmatprep.mubr.bf16.mxu0 0
    %377 = vmatmul.mubr.bf16.gmra.mxu0 %v331
    %v378 = vpop.f32.mrf.mxu0
    %v379 = vadd.f32 0.0, %v378
    %v380 = vpop.f32.mrf.mxu0
    %v381 = vpop.f32.mrf.mxu0
    %v382 = vadd.f32 0.0, %v381
    %v383 = vpop.f32.mrf.mxu0
    %384 = vdwg.mxu0
    %v385 = vadd.f32 %v309, %v371
    %v386 = vadd.f32 %v312, %v374
    %v387 = vadd.f32 %v317, %v379
    %v388 = vadd.f32 %v320, %v382
    %v389 = vld [vmem:[%s2] sm:$0x1]
    %v391 = vlaneseq
    %v392 = vshrl.u32 %v391, 7
    %v393 = vsub.s32 0, %v392
    %v394 = vrot.slane %v389, %v393
    %v396 = vmul.f32 %v385, %v394
    %v397 = vmul.f32 %v386, %v394
    %v398 = vmul.f32 %v387, %v394
    %v399 = vmul.f32 %v388, %v394
    %v400 = vld [vmem:[%s3] sm:$0x1]
    %v402 = vlaneseq
    %v403 = vshrl.u32 %v402, 7
    %v404 = vsub.s32 0, %v403
    %v405 = vrot.slane %v400, %v404
    %v407 = vadd.f32 %v396, %v405
    %v408 = vadd.f32 %v397, %v405
    %v409 = vadd.f32 %v398, %v405
    %v410 = vadd.f32 %v399, %v405
    %v411 = vmax.f32 %v407, 0.0
    %v412 = vmax.f32 %v408, 0.0
    %v413 = vmax.f32 %v409, 0.0
    %v414 = vmax.f32 %v410, 0.0
    %v419 = vcombine.high %v411, %v411
    %v421 = vunpack.c.l.s4 1983009808
    %v422 = vunpack.c.0.s8 %v421
    %v423 = vlaneseq
    %v424 = vshrl.u32 %v423, 7
    %v425 = vsub.s32 %v422, %v424
    %v426 = vrot.slane %v411, %v425
    %v428 = vunpack.c.l.s4 1983009808
    %v429 = vunpack.c.0.s8 %v428
    %v430 = vlaneseq
    %v431 = vshrl.u32 %v430, 7
    %v432 = vsub.s32 %v429, %v431
    %v433 = vrot.slane %v419, %v432
    %v434 = vcombine.high %v426, %v426
    %v435 = vcombine.high %v433, %v433
    %v436 = vcombine.high %v412, %v412
    %v438 = vunpack.c.l.s4 1983009808
    %v439 = vunpack.c.0.s8 %v438
    %v440 = vlaneseq
    %v441 = vshrl.u32 %v440, 7
    %v442 = vsub.s32 %v439, %v441
    %v443 = vrot.slane %v412, %v442
    %v445 = vunpack.c.l.s4 1983009808
    %v446 = vunpack.c.0.s8 %v445
    %v447 = vlaneseq
    %v448 = vshrl.u32 %v447, 7
    %v449 = vsub.s32 %v446, %v448
    %v450 = vrot.slane %v436, %v449
    %v451 = vcombine.high %v443, %v443
    %v452 = vcombine.high %v450, %v450
    %v453 = vcombine.high %v413, %v413
    %v455 = vunpack.c.l.s4 1983009808
    %v456 = vunpack.c.0.s8 %v455
    %v457 = vlaneseq
    %v458 = vshrl.u32 %v457, 7
    %v459 = vsub.s32 %v456, %v458
    %v460 = vrot.slane %v413, %v459
    %v462 = vunpack.c.l.s4 1983009808
    %v463 = vunpack.c.0.s8 %v462
    %v464 = vlaneseq
    %v465 = vshrl.u32 %v464, 7
    %v466 = vsub.s32 %v463, %v465
    %v467 = vrot.slane %v453, %v466
    %v468 = vcombine.high %v460, %v460
    %v469 = vcombine.high %v467, %v467
    %v470 = vcombine.high %v414, %v414
    %v472 = vunpack.c.l.s4 1983009808
    %v473 = vunpack.c.0.s8 %v472
    %v474 = vlaneseq
    %v475 = vshrl.u32 %v474, 7
    %v476 = vsub.s32 %v473, %v475
    %v477 = vrot.slane %v414, %v476
    %v479 = vunpack.c.l.s4 1983009808
    %v480 = vunpack.c.0.s8 %v479
    %v481 = vlaneseq
    %v482 = vshrl.u32 %v481, 7
    %v483 = vsub.s32 %v480, %v482
    %v484 = vrot.slane %v470, %v483
    %v485 = vcombine.high %v477, %v477
    %v486 = vcombine.high %v484, %v484
    %vm503 = vcmask 517120
    %v504 = vsel %vm503, %v426, -inf
    %v505 = vrot.slane %v504, 4
    %v506 = vmax.f32 %v504, %v505
    %v507 = vrot.slane %v506, 2
    %v508 = vmax.f32 %v506, %v507
    %v509 = vrot.slane %v508, 1
    %v510 = vmax.f32 %v508, %v509
    %v511 = vsel %vm503, %v434, -inf
    %v512 = vrot.slane %v511, 4
    %v513 = vmax.f32 %v511, %v512
    %v514 = vrot.slane %v513, 2
    %v515 = vmax.f32 %v513, %v514
    %v516 = vrot.slane %v515, 1
    %v517 = vmax.f32 %v515, %v516
    %v518 = vsel %vm503, %v433, -inf
    %v519 = vrot.slane %v518, 4
    %v520 = vmax.f32 %v518, %v519
    %v521 = vrot.slane %v520, 2
    %v522 = vmax.f32 %v520, %v521
    %v523 = vrot.slane %v522, 1
    %v524 = vmax.f32 %v522, %v523
    %v525 = vsel %vm503, %v435, -inf
    %v526 = vrot.slane %v525, 4
    %v527 = vmax.f32 %v525, %v526
    %v528 = vrot.slane %v527, 2
    %v529 = vmax.f32 %v527, %v528
    %v530 = vrot.slane %v529, 1
    %v531 = vmax.f32 %v529, %v530
    %v532 = vsel %vm503, %v443, -inf
    %v533 = vrot.slane %v532, 4
    %v534 = vmax.f32 %v532, %v533
    %v535 = vrot.slane %v534, 2
    %v536 = vmax.f32 %v534, %v535
    %v537 = vrot.slane %v536, 1
    %v538 = vmax.f32 %v536, %v537
    %v539 = vsel %vm503, %v451, -inf
    %v540 = vrot.slane %v539, 4
    %v541 = vmax.f32 %v539, %v540
    %v542 = vrot.slane %v541, 2
    %v543 = vmax.f32 %v541, %v542
    %v544 = vrot.slane %v543, 1
    %v545 = vmax.f32 %v543, %v544
    %v546 = vsel %vm503, %v450, -inf
    %v547 = vrot.slane %v546, 4
    %v548 = vmax.f32 %v546, %v547
    %v549 = vrot.slane %v548, 2
    %v550 = vmax.f32 %v548, %v549
    %v551 = vrot.slane %v550, 1
    %v552 = vmax.f32 %v550, %v551
    %v553 = vsel %vm503, %v452, -inf
    %v554 = vrot.slane %v553, 4
    %v555 = vmax.f32 %v553, %v554
    %v556 = vrot.slane %v555, 2
    %v557 = vmax.f32 %v555, %v556
    %v558 = vrot.slane %v557, 1
    %v559 = vmax.f32 %v557, %v558
    %v560 = vsel %vm503, %v460, -inf
    %v561 = vrot.slane %v560, 4
    %v562 = vmax.f32 %v560, %v561
    %v563 = vrot.slane %v562, 2
    %v564 = vmax.f32 %v562, %v563
    %v565 = vrot.slane %v564, 1
    %v566 = vmax.f32 %v564, %v565
    %v567 = vsel %vm503, %v468, -inf
    %v568 = vrot.slane %v567, 4
    %v569 = vmax.f32 %v567, %v568
    %v570 = vrot.slane %v569, 2
    %v571 = vmax.f32 %v569, %v570
    %v572 = vrot.slane %v571, 1
    %v573 = vmax.f32 %v571, %v572
    %v574 = vsel %vm503, %v467, -inf
    %v575 = vrot.slane %v574, 4
    %v576 = vmax.f32 %v574, %v575
    %v577 = vrot.slane %v576, 2
    %v578 = vmax.f32 %v576, %v577
    %v579 = vrot.slane %v578, 1
    %v580 = vmax.f32 %v578, %v579
    %v581 = vsel %vm503, %v469, -inf
    %v582 = vrot.slane %v581, 4
    %v583 = vmax.f32 %v581, %v582
    %v584 = vrot.slane %v583, 2
    %v585 = vmax.f32 %v583, %v584
    %v586 = vrot.slane %v585, 1
    %v587 = vmax.f32 %v585, %v586
    %v588 = vsel %vm503, %v477, -inf
    %v589 = vrot.slane %v588, 4
    %v590 = vmax.f32 %v588, %v589
    %v591 = vrot.slane %v590, 2
    %v592 = vmax.f32 %v590, %v591
    %v593 = vrot.slane %v592, 1
    %v594 = vmax.f32 %v592, %v593
    %v595 = vsel %vm503, %v485, -inf
    %v596 = vrot.slane %v595, 4
    %v597 = vmax.f32 %v595, %v596
    %v598 = vrot.slane %v597, 2
    %v599 = vmax.f32 %v597, %v598
    %v600 = vrot.slane %v599, 1
    %v601 = vmax.f32 %v599, %v600
    %v602 = vsel %vm503, %v484, -inf
    %v603 = vrot.slane %v602, 4
    %v604 = vmax.f32 %v602, %v603
    %v605 = vrot.slane %v604, 2
    %v606 = vmax.f32 %v604, %v605
    %v607 = vrot.slane %v606, 1
    %v608 = vmax.f32 %v606, %v607
    %v609 = vsel %vm503, %v486, -inf
    %v610 = vrot.slane %v609, 4
    %v611 = vmax.f32 %v609, %v610
    %v612 = vrot.slane %v611, 2
    %v613 = vmax.f32 %v611, %v612
    %v614 = vrot.slane %v613, 1
    %v615 = vmax.f32 %v613, %v614
    %vm631 = vcmask 1042434
    %v632 = vsel %vm631, %v517, %v510
    %vm633 = vcmask 1043459
    %v634 = vsel %vm633, %v524, %v632
    %vm635 = vcmask 1044484
    %v636 = vsel %vm635, %v531, %v634
    %vm637 = vcmask 1045509
    %v638 = vsel %vm637, %v538, %v636
    %vm639 = vcmask 1046534
    %v640 = vsel %vm639, %v545, %v638
    %vm641 = vcmask 1047559
    %v642 = vsel %vm641, %v552, %v640
    %vm643 = vcmask 1041409
    %v644 = vsel %vm643, %v566, %v559
    %v645 = vsel %vm631, %v573, %v644
    %v646 = vsel %vm633, %v580, %v645
    %v647 = vsel %vm635, %v587, %v646
    %v648 = vsel %vm637, %v594, %v647
    %v649 = vsel %vm639, %v601, %v648
    %v650 = vsel %vm641, %v608, %v649
    %v653 = vsel %vm85, 0.0, %v642
    %v655 = vsel %vm643, %v524, %v517
    %v656 = vsel %vm631, %v531, %v655
    %v657 = vsel %vm633, %v538, %v656
    %v658 = vsel %vm635, %v545, %v657
    %v659 = vsel %vm637, %v552, %v658
    %v660 = vsel %vm639, %v559, %v659
    %v661 = vsel %vm641, %v566, %v660
    %v662 = vsel %vm643, %v580, %v573
    %v663 = vsel %vm631, %v587, %v662
    %v664 = vsel %vm633, %v594, %v663
    %v665 = vsel %vm635, %v601, %v664
    %v666 = vsel %vm637, %v608, %v665
    %v667 = vsel %vm639, %v615, %v666
    %v670 = vsel %vm98, %v667, 0.0
    %vm671 = vcmp.lt.s32.totalorder %v112, 0
    %v672 = vsub.s32 0, %v112
    %v673 = vsel %vm671, %v672, %v112
    %v674 = vshrl.u32 %v673, 3
    %v675 = vand.u32 %v673, 7
    %v676 = vsub.s32 0, %v675
    %v677 = vsel %vm671, %v676, %v675
    %vm678 = vcmp.lt.s32.totalorder %v113, 0
    %v679 = vsub.s32 0, %v113
    %v680 = vsel %vm678, %v679, %v113
    %v681 = vshrl.u32 %v680, 3
    %v682 = vand.u32 %v680, 7
    %v683 = vsub.s32 0, %v682
    %v684 = vsel %vm678, %v683, %v682
    %vm685 = vcmp.ne.s32.totalorder %v677, 0
    %vm686 = vcmp.ne.s32.totalorder %v684, 0
    %vm687 = vcmp.lt.s32.totalorder %v677, 0
    %vm688 = vcmp.lt.s32.totalorder %v684, 0
    %vm689 = vmand %vm687, %vm685
    %vm690 = vmand %vm688, %vm686
    %v691 = vadd.s32 %v677, 8
    %v692 = vadd.s32 %v684, 8
    %v693 = vsel %vm689, %v691, %v677
    %v694 = vsel %vm690, %v692, %v684
    %vm695 = vcmp.eq.s32.totalorder %v693, 0
    %vm696 = vcmp.eq.s32.totalorder %v694, 0
    %v697 = vsel %vm695, 1, 0
    %v698 = vsel %vm696, 1, 0
    %vm699 = vcmp.eq.s32.totalorder %v697, 1
    %vm700 = vcmp.eq.s32.totalorder %v698, 1
    %v701 = vsel %vm699, 0.0, %v653
    %v702 = vsel %vm700, 0.0, %v650
    %vm703 = vcmp.eq.s32.totalorder %v693, 7
    %vm704 = vcmp.eq.s32.totalorder %v694, 7
    %v705 = vsel %vm703, 1, 0
    %v706 = vsel %vm704, 1, 0
    %vm707 = vcmp.eq.s32.totalorder %v705, 1
    %vm708 = vcmp.eq.s32.totalorder %v706, 1
    %v709 = vsel %vm707, 0.0, %v661
    %v710 = vsel %vm708, 0.0, %v670
    %v711 = vpack.c.bf16 %v702, %v701
    %v712 = vld [vmem:[%s4] sm:$0xf]
    %v713 = vld [vmem:[%s4 + $0x4] sm:$0xf]
    %v714 = vld [vmem:[%s4 + $0x8] sm:$0xf]
    %v715 = vld [vmem:[%s4 + $0xc] sm:$0xf]
    %v716 = vld [vmem:[%s4 + $0x10] sm:$0xf]
    %v717 = vld [vmem:[%s4 + $0x14] sm:$0xf]
    %v718 = vld [vmem:[%s4 + $0x18] sm:$0xf]
    %v719 = vld [vmem:[%s4 + $0x1c] sm:$0xf]
    %v720 = vpack.c.bf16 %v510, %v510
    %v721 = vpack.c.bf16 %v517, %v517
    %v722 = vpack.c.bf16 %v524, %v524
    %v723 = vpack.c.bf16 %v531, %v531
    %v724 = vpack.c.bf16 %v538, %v538
    %v725 = vpack.c.bf16 %v545, %v545
    %v726 = vpack.c.bf16 %v552, %v552
    %v727 = vpack.c.bf16 %v559, %v559
    %v728 = vpack.c.bf16 %v566, %v566
    %v729 = vpack.c.bf16 %v573, %v573
    %v730 = vpack.c.bf16 %v580, %v580
    %v731 = vpack.c.bf16 %v587, %v587
    %v732 = vpack.c.bf16 %v594, %v594
    %v733 = vpack.c.bf16 %v601, %v601
    %v734 = vpack.c.bf16 %v608, %v608
    %v735 = vpack.c.bf16 %v615, %v615
    %s736 = scalar_lea.vmem %s4, 32
    %v737 = vld [vmem:[%s736] sm:$0xf]
    %v738 = vld [vmem:[%s736 + $0x4] sm:$0xf]
    %v739 = vld [vmem:[%s736 + $0x8] sm:$0xf]
    %v740 = vld [vmem:[%s736 + $0xc] sm:$0xf]
    %v741 = vld [vmem:[%s736 + $0x10] sm:$0xf]
    %v742 = vld [vmem:[%s736 + $0x14] sm:$0xf]
    %v743 = vld [vmem:[%s736 + $0x18] sm:$0xf]
    %v744 = vld [vmem:[%s736 + $0x1c] sm:$0xf]
    %v761 = vunpack.c.l.b16 %v720
    %v762 = vunpack.c.l.b16 %v721
    %v763 = vunpack.c.l.b16 %v722
    %v764 = vunpack.c.l.b16 %v723
    %v765 = vunpack.c.l.b16 %v724
    %v766 = vunpack.c.l.b16 %v725
    %v767 = vunpack.c.l.b16 %v726
    %v768 = vunpack.c.l.b16 %v727
    %v769 = vunpack.c.l.b16 %v728
    %v770 = vunpack.c.l.b16 %v729
    %v771 = vunpack.c.l.b16 %v730
    %v772 = vunpack.c.l.b16 %v731
    %v773 = vunpack.c.l.b16 %v732
    %v774 = vunpack.c.l.b16 %v733
    %v775 = vunpack.c.l.b16 %v734
    %v776 = vunpack.c.l.b16 %v735
    %v777 = vsel %vm643, %v762, %v761
    %v778 = vsel %vm631, %v763, %v777
    %v779 = vsel %vm633, %v764, %v778
    %v780 = vsel %vm635, %v765, %v779
    %v781 = vsel %vm637, %v766, %v780
    %v782 = vsel %vm639, %v767, %v781
    %v783 = vsel %vm641, %v768, %v782
    %v784 = vsel %vm643, %v770, %v769
    %v785 = vsel %vm631, %v771, %v784
    %v786 = vsel %vm633, %v772, %v785
    %v787 = vsel %vm635, %v773, %v786
    %v788 = vsel %vm637, %v774, %v787
    %v789 = vsel %vm639, %v775, %v788
    %v790 = vsel %vm641, %v776, %v789
    %v791 = vpack.c.b16 %v790, %v783
    %v800 = vunpack.c.l.b16 %v737
    %v801 = vunpack.c.l.b16 %v738
    %v802 = vunpack.c.l.b16 %v739
    %v803 = vunpack.c.l.b16 %v740
    %v804 = vunpack.c.l.b16 %v741
    %v805 = vunpack.c.l.b16 %v742
    %v806 = vunpack.c.l.b16 %v743
    %v807 = vunpack.c.l.b16 %v744
    %v808 = vpack.c.b16 %v801, %v800
    %v809 = vpack.c.b16 %v803, %v802
    %v810 = vpack.c.b16 %v805, %v804
    %v811 = vpack.c.b16 %v807, %v806
    %vm816 = vcmask 523264
    %v818 = vsel %vm816, %v791, 0
    %820 = vmatprep.subr.bf16.mxu0 0
    %821 = vmatpush1.bf16.msra.mxu0 0
    %822 = vmatprep.subr.bf16.mxu0 0
    %823 = vmatpush1.bf16.msra.mxu0 0
    %824 = vmatprep.subr.bf16.mxu0 0
    %825 = vmatpush1.bf16.msra.mxu0 0
    %826 = vmatprep.subr.bf16.mxu0 0
    %827 = vmatpush1.bf16.msra.mxu0 0
    %828 = vmatprep.subr.bf16.mxu0 0
    %829 = vmatpush1.bf16.msra.mxu0 %v811
    %830 = vmatprep.subr.bf16.mxu0 0
    %831 = vmatpush1.bf16.msra.mxu0 %v810
    %832 = vmatprep.subr.bf16.mxu0 0
    %833 = vmatpush1.bf16.msra.mxu0 %v809
    %834 = vmatprep.subr.bf16.mxu0 0
    %835 = vmatpush1.bf16.msra.mxu0 %v808
    %836 = vmatprep.subr.bf16.mxu0 0
    %837 = vmatpush2.bf16.msra.mxu0 0
    %838 = vmatprep.subr.bf16.mxu0 0
    %839 = vmatpush2.bf16.msra.mxu0 0
    %840 = vmatprep.subr.bf16.mxu0 0
    %841 = vmatpush2.bf16.msra.mxu0 0
    %842 = vmatprep.subr.bf16.mxu0 0
    %843 = vmatpush2.bf16.msra.mxu0 0
    %844 = vmatprep.subr.bf16.mxu0 0
    %845 = vmatpush2.bf16.msra.mxu0 0
    %846 = vmatprep.subr.bf16.mxu0 0
    %847 = vmatpush2.bf16.msra.mxu0 0
    %848 = vmatprep.subr.bf16.mxu0 0
    %849 = vmatpush2.bf16.msra.mxu0 0
    %850 = vmatprep.subr.bf16.mxu0 0
    %851 = vmatpush2.bf16.msra.mxu0 0
    %852 = vmatprep.mubr.bf16.mxu0 0
    %853 = vmatmul.mubr.bf16.gmra.mxu0 %v818
    %v854 = vpop.f32.mrf.mxu0
    %v855 = vadd.f32 0.0, %v854
    %v856 = vpop.f32.mrf.mxu0
    %v857 = vpop.f32.mrf.mxu0
    %v858 = vadd.f32 0.0, %v857
    %v859 = vpop.f32.mrf.mxu0
    %860 = vdwg.mxu0
    %v869 = vunpack.c.l.b16 %v712
    %v870 = vunpack.c.l.b16 %v713
    %v871 = vunpack.c.l.b16 %v714
    %v872 = vunpack.c.l.b16 %v715
    %v873 = vunpack.c.l.b16 %v716
    %v874 = vunpack.c.l.b16 %v717
    %v875 = vunpack.c.l.b16 %v718
    %v876 = vunpack.c.l.b16 %v719
    %v877 = vpack.c.b16 %v870, %v869
    %v878 = vpack.c.b16 %v872, %v871
    %v879 = vpack.c.b16 %v874, %v873
    %v880 = vpack.c.b16 %v876, %v875
    %v886 = vsel %vm816, %v711, 0
    %888 = vmatprep.subr.bf16.mxu0 0
    %889 = vmatpush1.bf16.msra.mxu0 0
    %890 = vmatprep.subr.bf16.mxu0 0
    %891 = vmatpush1.bf16.msra.mxu0 0
    %892 = vmatprep.subr.bf16.mxu0 0
    %893 = vmatpush1.bf16.msra.mxu0 0
    %894 = vmatprep.subr.bf16.mxu0 0
    %895 = vmatpush1.bf16.msra.mxu0 0
    %896 = vmatprep.subr.bf16.mxu0 0
    %897 = vmatpush1.bf16.msra.mxu0 %v880
    %898 = vmatprep.subr.bf16.mxu0 0
    %899 = vmatpush1.bf16.msra.mxu0 %v879
    %900 = vmatprep.subr.bf16.mxu0 0
    %901 = vmatpush1.bf16.msra.mxu0 %v878
    %902 = vmatprep.subr.bf16.mxu0 0
    %903 = vmatpush1.bf16.msra.mxu0 %v877
    %904 = vmatprep.subr.bf16.mxu0 0
    %905 = vmatpush2.bf16.msra.mxu0 0
    %906 = vmatprep.subr.bf16.mxu0 0
    %907 = vmatpush2.bf16.msra.mxu0 0
    %908 = vmatprep.subr.bf16.mxu0 0
    %909 = vmatpush2.bf16.msra.mxu0 0
    %910 = vmatprep.subr.bf16.mxu0 0
    %911 = vmatpush2.bf16.msra.mxu0 0
    %912 = vmatprep.subr.bf16.mxu0 0
    %913 = vmatpush2.bf16.msra.mxu0 0
    %914 = vmatprep.subr.bf16.mxu0 0
    %915 = vmatpush2.bf16.msra.mxu0 0
    %916 = vmatprep.subr.bf16.mxu0 0
    %917 = vmatpush2.bf16.msra.mxu0 0
    %918 = vmatprep.subr.bf16.mxu0 0
    %919 = vmatpush2.bf16.msra.mxu0 0
    %920 = vmatprep.mubr.bf16.mxu0 0
    %921 = vmatmul.mubr.bf16.gmra.mxu0 %v886
    %v922 = vpop.f32.mrf.mxu0
    %v923 = vadd.f32 %v855, %v922
    %v924 = vpop.f32.mrf.mxu0
    %v925 = vpop.f32.mrf.mxu0
    %v926 = vadd.f32 %v858, %v925
    %v927 = vpop.f32.mrf.mxu0
    %928 = vdwg.mxu0
    %v929 = vpack.c.bf16 %v710, %v709
    %s930 = scalar_lea.vmem %s4, 64
    %v931 = vld [vmem:[%s930] sm:$0xf]
    %v932 = vld [vmem:[%s930 + $0x4] sm:$0xf]
    %v933 = vld [vmem:[%s930 + $0x8] sm:$0xf]
    %v934 = vld [vmem:[%s930 + $0xc] sm:$0xf]
    %v935 = vld [vmem:[%s930 + $0x10] sm:$0xf]
    %v936 = vld [vmem:[%s930 + $0x14] sm:$0xf]
    %v937 = vld [vmem:[%s930 + $0x18] sm:$0xf]
    %v938 = vld [vmem:[%s930 + $0x1c] sm:$0xf]
    %v947 = vunpack.c.l.b16 %v931
    %v948 = vunpack.c.l.b16 %v932
    %v949 = vunpack.c.l.b16 %v933
    %v950 = vunpack.c.l.b16 %v934
    %v951 = vunpack.c.l.b16 %v935
    %v952 = vunpack.c.l.b16 %v936
    %v953 = vunpack.c.l.b16 %v937
    %v954 = vunpack.c.l.b16 %v938
    %v955 = vpack.c.b16 %v948, %v947
    %v956 = vpack.c.b16 %v950, %v949
    %v957 = vpack.c.b16 %v952, %v951
    %v958 = vpack.c.b16 %v954, %v953
    %v964 = vsel %vm816, %v929, 0
    %966 = vmatprep.subr.bf16.mxu0 0
    %967 = vmatpush1.bf16.msra.mxu0 0
    %968 = vmatprep.subr.bf16.mxu0 0
    %969 = vmatpush1.bf16.msra.mxu0 0
    %970 = vmatprep.subr.bf16.mxu0 0
    %971 = vmatpush1.bf16.msra.mxu0 0
    %972 = vmatprep.subr.bf16.mxu0 0
    %973 = vmatpush1.bf16.msra.mxu0 0
    %974 = vmatprep.subr.bf16.mxu0 0
    %975 = vmatpush1.bf16.msra.mxu0 %v958
    %976 = vmatprep.subr.bf16.mxu0 0
    %977 = vmatpush1.bf16.msra.mxu0 %v957
    %978 = vmatprep.subr.bf16.mxu0 0
    %979 = vmatpush1.bf16.msra.mxu0 %v956
    %980 = vmatprep.subr.bf16.mxu0 0
    %981 = vmatpush1.bf16.msra.mxu0 %v955
    %982 = vmatprep.subr.bf16.mxu0 0
    %983 = vmatpush2.bf16.msra.mxu0 0
    %984 = vmatprep.subr.bf16.mxu0 0
    %985 = vmatpush2.bf16.msra.mxu0 0
    %986 = vmatprep.subr.bf16.mxu0 0
    %987 = vmatpush2.bf16.msra.mxu0 0
    %988 = vmatprep.subr.bf16.mxu0 0
    %989 = vmatpush2.bf16.msra.mxu0 0
    %990 = vmatprep.subr.bf16.mxu0 0
    %991 = vmatpush2.bf16.msra.mxu0 0
    %992 = vmatprep.subr.bf16.mxu0 0
    %993 = vmatpush2.bf16.msra.mxu0 0
    %994 = vmatprep.subr.bf16.mxu0 0
    %995 = vmatpush2.bf16.msra.mxu0 0
    %996 = vmatprep.subr.bf16.mxu0 0
    %997 = vmatpush2.bf16.msra.mxu0 0
    %998 = vmatprep.mubr.bf16.mxu0 0
    %999 = vmatmul.mubr.bf16.gmra.mxu0 %v964
    %v1000 = vpop.f32.mrf.mxu0
    %v1001 = vadd.f32 0.0, %v1000
    %v1002 = vpop.f32.mrf.mxu0
    %v1003 = vpop.f32.mrf.mxu0
    %v1004 = vadd.f32 0.0, %v1003
    %v1005 = vpop.f32.mrf.mxu0
    %1006 = vdwg.mxu0
    %v1007 = vadd.f32 %v923, %v1001
    %v1008 = vadd.f32 %v926, %v1004
    %v1009 = vld [vmem:[%s5] sm:$0x1]
    %v1011 = vlaneseq
    %v1012 = vshrl.u32 %v1011, 7
    %v1013 = vsub.s32 0, %v1012
    %v1014 = vrot.slane %v1009, %v1013
    %v1016 = vmul.f32 %v1007, %v1014
    %v1017 = vmul.f32 %v1008, %v1014
    %v1018 = vld [vmem:[%s6] sm:$0x1]
    %v1020 = vlaneseq
    %v1021 = vshrl.u32 %v1020, 7
    %v1022 = vsub.s32 0, %v1021
    %v1023 = vrot.slane %v1018, %v1022
    %v1025 = vadd.f32 %v1016, %v1023
    %v1026 = vadd.f32 %v1017, %v1023
    %v1027 = vmax.f32 %v1025, 0.0
    %v1028 = vmax.f32 %v1026, 0.0
    %v1031 = vcombine.high %v1027, %v1027
    %v1033 = vunpack.c.l.s4 1983009808
    %v1034 = vunpack.c.0.s8 %v1033
    %v1035 = vlaneseq
    %v1036 = vshrl.u32 %v1035, 7
    %v1037 = vsub.s32 %v1034, %v1036
    %v1038 = vrot.slane %v1027, %v1037
    %v1040 = vunpack.c.l.s4 1983009808
    %v1041 = vunpack.c.0.s8 %v1040
    %v1042 = vlaneseq
    %v1043 = vshrl.u32 %v1042, 7
    %v1044 = vsub.s32 %v1041, %v1043
    %v1045 = vrot.slane %v1031, %v1044
    %v1046 = vcombine.high %v1038, %v1038
    %v1047 = vcombine.high %v1045, %v1045
    %v1048 = vcombine.high %v1028, %v1028
    %v1050 = vunpack.c.l.s4 1983009808
    %v1051 = vunpack.c.0.s8 %v1050
    %v1052 = vlaneseq
    %v1053 = vshrl.u32 %v1052, 7
    %v1054 = vsub.s32 %v1051, %v1053
    %v1055 = vrot.slane %v1028, %v1054
    %v1057 = vunpack.c.l.s4 1983009808
    %v1058 = vunpack.c.0.s8 %v1057
    %v1059 = vlaneseq
    %v1060 = vshrl.u32 %v1059, 7
    %v1061 = vsub.s32 %v1058, %v1060
    %v1062 = vrot.slane %v1048, %v1061
    %v1063 = vcombine.high %v1055, %v1055
    %v1064 = vcombine.high %v1062, %v1062
    %v1073 = vsel %vm210, %v1038, -inf
    %v1074 = vrot.slane %v1073, 4
    %v1075 = vmax.f32 %v1073, %v1074
    %v1076 = vrot.slane %v1075, 2
    %v1077 = vmax.f32 %v1075, %v1076
    %v1078 = vrot.slane %v1077, 1
    %v1079 = vmax.f32 %v1077, %v1078
    %v1080 = vsel %vm210, %v1046, -inf
    %v1081 = vrot.slane %v1080, 4
    %v1082 = vmax.f32 %v1080, %v1081
    %v1083 = vrot.slane %v1082, 2
    %v1084 = vmax.f32 %v1082, %v1083
    %v1085 = vrot.slane %v1084, 1
    %v1086 = vmax.f32 %v1084, %v1085
    %v1087 = vsel %vm210, %v1045, -inf
    %v1088 = vrot.slane %v1087, 4
    %v1089 = vmax.f32 %v1087, %v1088
    %v1090 = vrot.slane %v1089, 2
    %v1091 = vmax.f32 %v1089, %v1090
    %v1092 = vrot.slane %v1091, 1
    %v1093 = vmax.f32 %v1091, %v1092
    %v1094 = vsel %vm210, %v1047, -inf
    %v1095 = vrot.slane %v1094, 4
    %v1096 = vmax.f32 %v1094, %v1095
    %v1097 = vrot.slane %v1096, 2
    %v1098 = vmax.f32 %v1096, %v1097
    %v1099 = vrot.slane %v1098, 1
    %v1100 = vmax.f32 %v1098, %v1099
    %v1101 = vsel %vm210, %v1055, -inf
    %v1102 = vrot.slane %v1101, 4
    %v1103 = vmax.f32 %v1101, %v1102
    %v1104 = vrot.slane %v1103, 2
    %v1105 = vmax.f32 %v1103, %v1104
    %v1106 = vrot.slane %v1105, 1
    %v1107 = vmax.f32 %v1105, %v1106
    %v1108 = vsel %vm210, %v1063, -inf
    %v1109 = vrot.slane %v1108, 4
    %v1110 = vmax.f32 %v1108, %v1109
    %v1111 = vrot.slane %v1110, 2
    %v1112 = vmax.f32 %v1110, %v1111
    %v1113 = vrot.slane %v1112, 1
    %v1114 = vmax.f32 %v1112, %v1113
    %v1115 = vsel %vm210, %v1062, -inf
    %v1116 = vrot.slane %v1115, 4
    %v1117 = vmax.f32 %v1115, %v1116
    %v1118 = vrot.slane %v1117, 2
    %v1119 = vmax.f32 %v1117, %v1118
    %v1120 = vrot.slane %v1119, 1
    %v1121 = vmax.f32 %v1119, %v1120
    %v1122 = vsel %vm210, %v1064, -inf
    %v1123 = vrot.slane %v1122, 4
    %v1124 = vmax.f32 %v1122, %v1123
    %v1125 = vrot.slane %v1124, 2
    %v1126 = vmax.f32 %v1124, %v1125
    %v1127 = vrot.slane %v1126, 1
    %v1128 = vmax.f32 %v1126, %v1127
    %v1136 = vsel %vm631, %v1086, %v1079
    %v1137 = vsel %vm633, %v1093, %v1136
    %v1138 = vsel %vm635, %v1100, %v1137
    %v1139 = vsel %vm637, %v1107, %v1138
    %v1140 = vsel %vm639, %v1114, %v1139
    %v1141 = vsel %vm641, %v1121, %v1140
    %v1143 = vsel %vm85, 0.0, %v1141
    %v1145 = vsel %vm643, %v1093, %v1086
    %v1146 = vsel %vm631, %v1100, %v1145
    %v1147 = vsel %vm633, %v1107, %v1146
    %v1148 = vsel %vm635, %v1114, %v1147
    %v1149 = vsel %vm637, %v1121, %v1148
    %v1150 = vsel %vm639, %v1128, %v1149
    %v1152 = vsel %vm98, %v1150, 0.0
    %vm1153 = vcmp.lt.s32.totalorder %v112, 0
    %v1154 = vsub.s32 0, %v112
    %v1155 = vsel %vm1153, %v1154, %v112
    %v1156 = vshrl.u32 %v1155, 2
    %v1157 = vand.u32 %v1155, 3
    %v1158 = vsub.s32 0, %v1157
    %v1159 = vsel %vm1153, %v1158, %v1157
    %vm1160 = vcmp.ne.s32.totalorder %v1159, 0
    %vm1161 = vcmp.lt.s32.totalorder %v1159, 0
    %vm1162 = vmand %vm1161, %vm1160
    %v1163 = vadd.s32 %v1159, 4
    %v1164 = vsel %vm1162, %v1163, %v1159
    %vm1165 = vcmp.eq.s32.totalorder %v1164, 0
    %v1166 = vsel %vm1165, 1, 0
    %vm1167 = vcmp.eq.s32.totalorder %v1166, 1
    %v1168 = vsel %vm1167, 0.0, %v1143
    %vm1169 = vcmp.eq.s32.totalorder %v1164, 3
    %v1170 = vsel %vm1169, 1, 0
    %vm1171 = vcmp.eq.s32.totalorder %v1170, 1
    %v1172 = vsel %vm1171, 0.0, %v1152
    %v1173 = vpack.c.bf16 %v1168, %v1168
    %v1174 = vld [vmem:[#allocation2] sm:$0xff]
    %v1175 = vld [vmem:[#allocation2 + $0x8] sm:$0xff]
    %v1176 = vld [vmem:[#allocation2 + $0x10] sm:$0xff]
    %v1177 = vld [vmem:[#allocation2 + $0x18] sm:$0xff]
    %v1178 = vld [vmem:[#allocation2 + $0x20] sm:$0xff]
    %v1179 = vld [vmem:[#allocation2 + $0x28] sm:$0xff]
    %v1180 = vld [vmem:[#allocation2 + $0x30] sm:$0xff]
    %v1181 = vld [vmem:[#allocation2 + $0x38] sm:$0xff]
    %v1182 = vld [vmem:[#allocation2 + $0x40] sm:$0xff]
    %v1183 = vld [vmem:[#allocation2 + $0x48] sm:$0xff]
    %v1184 = vld [vmem:[#allocation2 + $0x50] sm:$0xff]
    %v1185 = vld [vmem:[#allocation2 + $0x58] sm:$0xff]
    %v1186 = vld [vmem:[#allocation2 + $0x60] sm:$0xff]
    %v1187 = vld [vmem:[#allocation2 + $0x68] sm:$0xff]
    %v1188 = vld [vmem:[#allocation2 + $0x70] sm:$0xff]
    %v1189 = vld [vmem:[#allocation2 + $0x78] sm:$0xff]
    %v1190 = vpack.c.bf16 %v1079, %v1079
    %v1191 = vpack.c.bf16 %v1086, %v1086
    %v1192 = vpack.c.bf16 %v1093, %v1093
    %v1193 = vpack.c.bf16 %v1100, %v1100
    %v1194 = vpack.c.bf16 %v1107, %v1107
    %v1195 = vpack.c.bf16 %v1114, %v1114
    %v1196 = vpack.c.bf16 %v1121, %v1121
    %v1197 = vpack.c.bf16 %v1128, %v1128
    %s1198 = scalar_lea.vmem [#allocation2], 128
    %v1199 = vld [vmem:[%s1198] sm:$0xff]
    %v1200 = vld [vmem:[%s1198 + $0x8] sm:$0xff]
    %v1201 = vld [vmem:[%s1198 + $0x10] sm:$0xff]
    %v1202 = vld [vmem:[%s1198 + $0x18] sm:$0xff]
    %v1203 = vld [vmem:[%s1198 + $0x20] sm:$0xff]
    %v1204 = vld [vmem:[%s1198 + $0x28] sm:$0xff]
    %v1205 = vld [vmem:[%s1198 + $0x30] sm:$0xff]
    %v1206 = vld [vmem:[%s1198 + $0x38] sm:$0xff]
    %v1207 = vld [vmem:[%s1198 + $0x40] sm:$0xff]
    %v1208 = vld [vmem:[%s1198 + $0x48] sm:$0xff]
    %v1209 = vld [vmem:[%s1198 + $0x50] sm:$0xff]
    %v1210 = vld [vmem:[%s1198 + $0x58] sm:$0xff]
    %v1211 = vld [vmem:[%s1198 + $0x60] sm:$0xff]
    %v1212 = vld [vmem:[%s1198 + $0x68] sm:$0xff]
    %v1213 = vld [vmem:[%s1198 + $0x70] sm:$0xff]
    %v1214 = vld [vmem:[%s1198 + $0x78] sm:$0xff]
    %v1223 = vunpack.c.l.b16 %v1190
    %v1224 = vunpack.c.l.b16 %v1191
    %v1225 = vunpack.c.l.b16 %v1192
    %v1226 = vunpack.c.l.b16 %v1193
    %v1227 = vunpack.c.l.b16 %v1194
    %v1228 = vunpack.c.l.b16 %v1195
    %v1229 = vunpack.c.l.b16 %v1196
    %v1230 = vunpack.c.l.b16 %v1197
    %v1231 = vsel %vm643, %v1224, %v1223
    %v1232 = vsel %vm631, %v1225, %v1231
    %v1233 = vsel %vm633, %v1226, %v1232
    %v1234 = vsel %vm635, %v1227, %v1233
    %v1235 = vsel %vm637, %v1228, %v1234
    %v1236 = vsel %vm639, %v1229, %v1235
    %v1237 = vsel %vm641, %v1230, %v1236
    %v1238 = vpack.c.b16 %v1237, %v1237
    %v1256 = vunpack.c.l.b16 %v1199
    %v1257 = vunpack.c.h.b16 %v1199
    %v1258 = vunpack.c.l.b16 %v1200
    %v1259 = vunpack.c.h.b16 %v1200
    %v1260 = vunpack.c.l.b16 %v1201
    %v1261 = vunpack.c.h.b16 %v1201
    %v1262 = vunpack.c.l.b16 %v1202
    %v1263 = vunpack.c.h.b16 %v1202
    %v1264 = vunpack.c.l.b16 %v1203
    %v1265 = vunpack.c.h.b16 %v1203
    %v1266 = vunpack.c.l.b16 %v1204
    %v1267 = vunpack.c.h.b16 %v1204
    %v1268 = vunpack.c.l.b16 %v1205
    %v1269 = vunpack.c.h.b16 %v1205
    %v1270 = vunpack.c.l.b16 %v1206
    %v1271 = vunpack.c.h.b16 %v1206
    %v1272 = vunpack.c.l.b16 %v1207
    %v1273 = vunpack.c.h.b16 %v1207
    %v1274 = vunpack.c.l.b16 %v1208
    %v1275 = vunpack.c.h.b16 %v1208
    %v1276 = vunpack.c.l.b16 %v1209
    %v1277 = vunpack.c.h.b16 %v1209
    %v1278 = vunpack.c.l.b16 %v1210
    %v1279 = vunpack.c.h.b16 %v1210
    %v1280 = vunpack.c.l.b16 %v1211
    %v1281 = vunpack.c.h.b16 %v1211
    %v1282 = vunpack.c.l.b16 %v1212
    %v1283 = vunpack.c.h.b16 %v1212
    %v1284 = vunpack.c.l.b16 %v1213
    %v1285 = vunpack.c.h.b16 %v1213
    %v1286 = vunpack.c.l.b16 %v1214
    %v1287 = vunpack.c.h.b16 %v1214
    %v1288 = vpack.c.b16 %v1258, %v1256
    %v1289 = vpack.c.b16 %v1259, %v1257
    %v1290 = vpack.c.b16 %v1262, %v1260
    %v1291 = vpack.c.b16 %v1263, %v1261
    %v1292 = vpack.c.b16 %v1266, %v1264
    %v1293 = vpack.c.b16 %v1267, %v1265
    %v1294 = vpack.c.b16 %v1270, %v1268
    %v1295 = vpack.c.b16 %v1271, %v1269
    %v1296 = vpack.c.b16 %v1274, %v1272
    %v1297 = vpack.c.b16 %v1275, %v1273
    %v1298 = vpack.c.b16 %v1278, %v1276
    %v1299 = vpack.c.b16 %v1279, %v1277
    %v1300 = vpack.c.b16 %v1282, %v1280
    %v1301 = vpack.c.b16 %v1283, %v1281
    %v1302 = vpack.c.b16 %v1286, %v1284
    %v1303 = vpack.c.b16 %v1287, %v1285
    %1320 = vmatprep.subr.bf16.mxu0 %v1303
    %1321 = vmatpush1.bf16.msra.mxu0 %v1302
    %1322 = vmatprep.subr.bf16.mxu0 %v1301
    %1323 = vmatpush1.bf16.msra.mxu0 %v1300
    %1324 = vmatprep.subr.bf16.mxu0 %v1299
    %1325 = vmatpush1.bf16.msra.mxu0 %v1298
    %1326 = vmatprep.subr.bf16.mxu0 %v1297
    %1327 = vmatpush1.bf16.msra.mxu0 %v1296
    %1328 = vmatprep.subr.bf16.mxu0 %v1295
    %1329 = vmatpush1.bf16.msra.mxu0 %v1294
    %1330 = vmatprep.subr.bf16.mxu0 %v1293
    %1331 = vmatpush1.bf16.msra.mxu0 %v1292
    %1332 = vmatprep.subr.bf16.mxu0 %v1291
    %1333 = vmatpush1.bf16.msra.mxu0 %v1290
    %1334 = vmatprep.subr.bf16.mxu0 %v1289
    %1335 = vmatpush1.bf16.msra.mxu0 %v1288
    %1336 = vmatprep.subr.bf16.mxu0 0
    %1337 = vmatpush2.bf16.msra.mxu0 0
    %1338 = vmatprep.subr.bf16.mxu0 0
    %1339 = vmatpush2.bf16.msra.mxu0 0
    %1340 = vmatprep.subr.bf16.mxu0 0
    %1341 = vmatpush2.bf16.msra.mxu0 0
    %1342 = vmatprep.subr.bf16.mxu0 0
    %1343 = vmatpush2.bf16.msra.mxu0 0
    %1344 = vmatprep.subr.bf16.mxu0 0
    %1345 = vmatpush2.bf16.msra.mxu0 0
    %1346 = vmatprep.subr.bf16.mxu0 0
    %1347 = vmatpush2.bf16.msra.mxu0 0
    %1348 = vmatprep.subr.bf16.mxu0 0
    %1349 = vmatpush2.bf16.msra.mxu0 0
    %1350 = vmatprep.subr.bf16.mxu0 0
    %1351 = vmatpush2.bf16.msra.mxu0 0
    %1352 = vmatprep.mubr.bf16.mxu0 0
    %1353 = vmatmul.mubr.bf16.gmra.mxu0 %v1238
    %v1354 = vpop.f32.mrf.mxu0
    %v1355 = vadd.f32 0.0, %v1354
    %v1356 = vpop.f32.mrf.mxu0
    %v1357 = vadd.f32 0.0, %v1356
    %v1358 = vpop.f32.mrf.mxu0
    %v1359 = vpop.f32.mrf.mxu0
    %1360 = vdwg.mxu0
    %v1377 = vunpack.c.l.b16 %v1174
    %v1378 = vunpack.c.h.b16 %v1174
    %v1379 = vunpack.c.l.b16 %v1175
    %v1380 = vunpack.c.h.b16 %v1175
    %v1381 = vunpack.c.l.b16 %v1176
    %v1382 = vunpack.c.h.b16 %v1176
    %v1383 = vunpack.c.l.b16 %v1177
    %v1384 = vunpack.c.h.b16 %v1177
    %v1385 = vunpack.c.l.b16 %v1178
    %v1386 = vunpack.c.h.b16 %v1178
    %v1387 = vunpack.c.l.b16 %v1179
    %v1388 = vunpack.c.h.b16 %v1179
    %v1389 = vunpack.c.l.b16 %v1180
    %v1390 = vunpack.c.h.b16 %v1180
    %v1391 = vunpack.c.l.b16 %v1181
    %v1392 = vunpack.c.h.b16 %v1181
    %v1393 = vunpack.c.l.b16 %v1182
    %v1394 = vunpack.c.h.b16 %v1182
    %v1395 = vunpack.c.l.b16 %v1183
    %v1396 = vunpack.c.h.b16 %v1183
    %v1397 = vunpack.c.l.b16 %v1184
    %v1398 = vunpack.c.h.b16 %v1184
    %v1399 = vunpack.c.l.b16 %v1185
    %v1400 = vunpack.c.h.b16 %v1185
    %v1401 = vunpack.c.l.b16 %v1186
    %v1402 = vunpack.c.h.b16 %v1186
    %v1403 = vunpack.c.l.b16 %v1187
    %v1404 = vunpack.c.h.b16 %v1187
    %v1405 = vunpack.c.l.b16 %v1188
    %v1406 = vunpack.c.h.b16 %v1188
    %v1407 = vunpack.c.l.b16 %v1189
    %v1408 = vunpack.c.h.b16 %v1189
    %v1409 = vpack.c.b16 %v1379, %v1377
    %v1410 = vpack.c.b16 %v1380, %v1378
    %v1411 = vpack.c.b16 %v1383, %v1381
    %v1412 = vpack.c.b16 %v1384, %v1382
    %v1413 = vpack.c.b16 %v1387, %v1385
    %v1414 = vpack.c.b16 %v1388, %v1386
    %v1415 = vpack.c.b16 %v1391, %v1389
    %v1416 = vpack.c.b16 %v1392, %v1390
    %v1417 = vpack.c.b16 %v1395, %v1393
    %v1418 = vpack.c.b16 %v1396, %v1394
    %v1419 = vpack.c.b16 %v1399, %v1397
    %v1420 = vpack.c.b16 %v1400, %v1398
    %v1421 = vpack.c.b16 %v1403, %v1401
    %v1422 = vpack.c.b16 %v1404, %v1402
    %v1423 = vpack.c.b16 %v1407, %v1405
    %v1424 = vpack.c.b16 %v1408, %v1406
    %1441 = vmatprep.subr.bf16.mxu0 %v1424
    %1442 = vmatpush1.bf16.msra.mxu0 %v1423
    %1443 = vmatprep.subr.bf16.mxu0 %v1422
    %1444 = vmatpush1.bf16.msra.mxu0 %v1421
    %1445 = vmatprep.subr.bf16.mxu0 %v1420
    %1446 = vmatpush1.bf16.msra.mxu0 %v1419
    %1447 = vmatprep.subr.bf16.mxu0 %v1418
    %1448 = vmatpush1.bf16.msra.mxu0 %v1417
    %1449 = vmatprep.subr.bf16.mxu0 %v1416
    %1450 = vmatpush1.bf16.msra.mxu0 %v1415
    %1451 = vmatprep.subr.bf16.mxu0 %v1414
    %1452 = vmatpush1.bf16.msra.mxu0 %v1413
    %1453 = vmatprep.subr.bf16.mxu0 %v1412
    %1454 = vmatpush1.bf16.msra.mxu0 %v1411
    %1455 = vmatprep.subr.bf16.mxu0 %v1410
    %1456 = vmatpush1.bf16.msra.mxu0 %v1409
    %1457 = vmatprep.subr.bf16.mxu0 0
    %1458 = vmatpush2.bf16.msra.mxu0 0
    %1459 = vmatprep.subr.bf16.mxu0 0
    %1460 = vmatpush2.bf16.msra.mxu0 0
    %1461 = vmatprep.subr.bf16.mxu0 0
    %1462 = vmatpush2.bf16.msra.mxu0 0
    %1463 = vmatprep.subr.bf16.mxu0 0
    %1464 = vmatpush2.bf16.msra.mxu0 0
    %1465 = vmatprep.subr.bf16.mxu0 0
    %1466 = vmatpush2.bf16.msra.mxu0 0
    %1467 = vmatprep.subr.bf16.mxu0 0
    %1468 = vmatpush2.bf16.msra.mxu0 0
    %1469 = vmatprep.subr.bf16.mxu0 0
    %1470 = vmatpush2.bf16.msra.mxu0 0
    %1471 = vmatprep.subr.bf16.mxu0 0
    %1472 = vmatpush2.bf16.msra.mxu0 0
    %1473 = vmatprep.mubr.bf16.mxu0 0
    %1474 = vmatmul.mubr.bf16.gmra.mxu0 %v1173
    %v1475 = vpop.f32.mrf.mxu0
    %v1476 = vadd.f32 %v1355, %v1475
    %v1477 = vpop.f32.mrf.mxu0
    %v1478 = vadd.f32 %v1357, %v1477
    %v1479 = vpop.f32.mrf.mxu0
    %v1480 = vpop.f32.mrf.mxu0
    %1481 = vdwg.mxu0
    %v1482 = vpack.c.bf16 %v1172, %v1172
    %s1483 = scalar_lea.vmem [#allocation2], 256
    %v1484 = vld [vmem:[%s1483] sm:$0xff]
    %v1485 = vld [vmem:[%s1483 + $0x8] sm:$0xff]
    %v1486 = vld [vmem:[%s1483 + $0x10] sm:$0xff]
    %v1487 = vld [vmem:[%s1483 + $0x18] sm:$0xff]
    %v1488 = vld [vmem:[%s1483 + $0x20] sm:$0xff]
    %v1489 = vld [vmem:[%s1483 + $0x28] sm:$0xff]
    %v1490 = vld [vmem:[%s1483 + $0x30] sm:$0xff]
    %v1491 = vld [vmem:[%s1483 + $0x38] sm:$0xff]
    %v1492 = vld [vmem:[%s1483 + $0x40] sm:$0xff]
    %v1493 = vld [vmem:[%s1483 + $0x48] sm:$0xff]
    %v1494 = vld [vmem:[%s1483 + $0x50] sm:$0xff]
    %v1495 = vld [vmem:[%s1483 + $0x58] sm:$0xff]
    %v1496 = vld [vmem:[%s1483 + $0x60] sm:$0xff]
    %v1497 = vld [vmem:[%s1483 + $0x68] sm:$0xff]
    %v1498 = vld [vmem:[%s1483 + $0x70] sm:$0xff]
    %v1499 = vld [vmem:[%s1483 + $0x78] sm:$0xff]
    %v1516 = vunpack.c.l.b16 %v1484
    %v1517 = vunpack.c.h.b16 %v1484
    %v1518 = vunpack.c.l.b16 %v1485
    %v1519 = vunpack.c.h.b16 %v1485
    %v1520 = vunpack.c.l.b16 %v1486
    %v1521 = vunpack.c.h.b16 %v1486
    %v1522 = vunpack.c.l.b16 %v1487
    %v1523 = vunpack.c.h.b16 %v1487
    %v1524 = vunpack.c.l.b16 %v1488
    %v1525 = vunpack.c.h.b16 %v1488
    %v1526 = vunpack.c.l.b16 %v1489
    %v1527 = vunpack.c.h.b16 %v1489
    %v1528 = vunpack.c.l.b16 %v1490
    %v1529 = vunpack.c.h.b16 %v1490
    %v1530 = vunpack.c.l.b16 %v1491
    %v1531 = vunpack.c.h.b16 %v1491
    %v1532 = vunpack.c.l.b16 %v1492
    %v1533 = vunpack.c.h.b16 %v1492
    %v1534 = vunpack.c.l.b16 %v1493
    %v1535 = vunpack.c.h.b16 %v1493
    %v1536 = vunpack.c.l.b16 %v1494
    %v1537 = vunpack.c.h.b16 %v1494
    %v1538 = vunpack.c.l.b16 %v1495
    %v1539 = vunpack.c.h.b16 %v1495
    %v1540 = vunpack.c.l.b16 %v1496
    %v1541 = vunpack.c.h.b16 %v1496
    %v1542 = vunpack.c.l.b16 %v1497
    %v1543 = vunpack.c.h.b16 %v1497
    %v1544 = vunpack.c.l.b16 %v1498
    %v1545 = vunpack.c.h.b16 %v1498
    %v1546 = vunpack.c.l.b16 %v1499
    %v1547 = vunpack.c.h.b16 %v1499
    %v1548 = vpack.c.b16 %v1518, %v1516
    %v1549 = vpack.c.b16 %v1519, %v1517
    %v1550 = vpack.c.b16 %v1522, %v1520
    %v1551 = vpack.c.b16 %v1523, %v1521
    %v1552 = vpack.c.b16 %v1526, %v1524
    %v1553 = vpack.c.b16 %v1527, %v1525
    %v1554 = vpack.c.b16 %v1530, %v1528
    %v1555 = vpack.c.b16 %v1531, %v1529
    %v1556 = vpack.c.b16 %v1534, %v1532
    %v1557 = vpack.c.b16 %v1535, %v1533
    %v1558 = vpack.c.b16 %v1538, %v1536
    %v1559 = vpack.c.b16 %v1539, %v1537
    %v1560 = vpack.c.b16 %v1542, %v1540
    %v1561 = vpack.c.b16 %v1543, %v1541
    %v1562 = vpack.c.b16 %v1546, %v1544
    %v1563 = vpack.c.b16 %v1547, %v1545
    %1580 = vmatprep.subr.bf16.mxu0 %v1563
    %1581 = vmatpush1.bf16.msra.mxu0 %v1562
    %1582 = vmatprep.subr.bf16.mxu0 %v1561
    %1583 = vmatpush1.bf16.msra.mxu0 %v1560
    %1584 = vmatprep.subr.bf16.mxu0 %v1559
    %1585 = vmatpush1.bf16.msra.mxu0 %v1558
    %1586 = vmatprep.subr.bf16.mxu0 %v1557
    %1587 = vmatpush1.bf16.msra.mxu0 %v1556
    %1588 = vmatprep.subr.bf16.mxu0 %v1555
    %1589 = vmatpush1.bf16.msra.mxu0 %v1554
    %1590 = vmatprep.subr.bf16.mxu0 %v1553
    %1591 = vmatpush1.bf16.msra.mxu0 %v1552
    %1592 = vmatprep.subr.bf16.mxu0 %v1551
    %1593 = vmatpush1.bf16.msra.mxu0 %v1550
    %1594 = vmatprep.subr.bf16.mxu0 %v1549
    %1595 = vmatpush1.bf16.msra.mxu0 %v1548
    %1596 = vmatprep.subr.bf16.mxu0 0
    %1597 = vmatpush2.bf16.msra.mxu0 0
    %1598 = vmatprep.subr.bf16.mxu0 0
    %1599 = vmatpush2.bf16.msra.mxu0 0
    %1600 = vmatprep.subr.bf16.mxu0 0
    %1601 = vmatpush2.bf16.msra.mxu0 0
    %1602 = vmatprep.subr.bf16.mxu0 0
    %1603 = vmatpush2.bf16.msra.mxu0 0
    %1604 = vmatprep.subr.bf16.mxu0 0
    %1605 = vmatpush2.bf16.msra.mxu0 0
    %1606 = vmatprep.subr.bf16.mxu0 0
    %1607 = vmatpush2.bf16.msra.mxu0 0
    %1608 = vmatprep.subr.bf16.mxu0 0
    %1609 = vmatpush2.bf16.msra.mxu0 0
    %1610 = vmatprep.subr.bf16.mxu0 0
    %1611 = vmatpush2.bf16.msra.mxu0 0
    %1612 = vmatprep.mubr.bf16.mxu0 0
    %1613 = vmatmul.mubr.bf16.gmra.mxu0 %v1482
    %v1614 = vpop.f32.mrf.mxu0
    %v1615 = vadd.f32 0.0, %v1614
    %v1616 = vpop.f32.mrf.mxu0
    %v1617 = vadd.f32 0.0, %v1616
    %v1618 = vpop.f32.mrf.mxu0
    %v1619 = vpop.f32.mrf.mxu0
    %1620 = vdwg.mxu0
    %v1621 = vadd.f32 %v1476, %v1615
    %v1622 = vadd.f32 %v1478, %v1617
    %v1623 = vld [vmem:[%s8] sm:$0x3]
    %v1625 = vlaneseq
    %v1626 = vshrl.u32 %v1625, 7
    %v1627 = vsub.s32 0, %v1626
    %v1628 = vrot.slane %v1623, %v1627
    %v1629 = vlaneseq
    %v1630 = vshrl.u32 %v1629, 7
    %v1631 = vsub.s32 1, %v1630
    %v1632 = vrot.slane %v1623, %v1631
    %v1635 = vmul.f32 %v1621, %v1628
    %v1636 = vmul.f32 %v1622, %v1632
    %v1637 = vld [vmem:[%s9] sm:$0x3]
    %v1639 = vlaneseq
    %v1640 = vshrl.u32 %v1639, 7
    %v1641 = vsub.s32 0, %v1640
    %v1642 = vrot.slane %v1637, %v1641
    %v1643 = vlaneseq
    %v1644 = vshrl.u32 %v1643, 7
    %v1645 = vsub.s32 1, %v1644
    %v1646 = vrot.slane %v1637, %v1645
    %v1649 = vadd.f32 %v1635, %v1642
    %v1650 = vadd.f32 %v1636, %v1646
    %v1651 = vmax.f32 %v1649, 0.0
    %v1652 = vmax.f32 %v1650, 0.0
    %v1655 = vcombine.low %v1651, %v1652
    %v1656 = vcombine.high %v1651, %v1652
    %v1658 = vunpack.c.l.s4 1983009808
    %v1659 = vunpack.c.0.s8 %v1658
    %v1660 = vlaneseq
    %v1661 = vshrl.u32 %v1660, 7
    %v1662 = vsub.s32 %v1659, %v1661
    %v1663 = vrot.slane %v1655, %v1662
    %v1665 = vunpack.c.l.s4 1983009808
    %v1666 = vunpack.c.0.s8 %v1665
    %v1667 = vlaneseq
    %v1668 = vshrl.u32 %v1667, 7
    %v1669 = vsub.s32 %v1666, %v1668
    %v1670 = vrot.slane %v1656, %v1669
    %v1671 = vcombine.high %v1663, %v1663
    %v1672 = vcombine.high %v1670, %v1670
    %v1674 = vunpack.c.l.s4 1983009808
    %v1675 = vunpack.c.0.s8 %v1674
    %v1676 = vlaneseq
    %v1677 = vshrl.u32 %v1676, 7
    %v1678 = vsub.s32 %v1675, %v1677
    %v1679 = vrot.slane %v1663, %v1678
    %v1680 = vcombine.high %v1679, %v1679
    %v1682 = vunpack.c.l.s4 1983009808
    %v1683 = vunpack.c.0.s8 %v1682
    %v1684 = vlaneseq
    %v1685 = vshrl.u32 %v1684, 7
    %v1686 = vsub.s32 %v1683, %v1685
    %v1687 = vrot.slane %v1671, %v1686
    %v1688 = vcombine.high %v1687, %v1687
    %v1690 = vunpack.c.l.s4 1983009808
    %v1691 = vunpack.c.0.s8 %v1690
    %v1692 = vlaneseq
    %v1693 = vshrl.u32 %v1692, 7
    %v1694 = vsub.s32 %v1691, %v1693
    %v1695 = vrot.slane %v1670, %v1694
    %v1696 = vcombine.high %v1695, %v1695
    %v1698 = vunpack.c.l.s4 1983009808
    %v1699 = vunpack.c.0.s8 %v1698
    %v1700 = vlaneseq
    %v1701 = vshrl.u32 %v1700, 7
    %v1702 = vsub.s32 %v1699, %v1701
    %v1703 = vrot.slane %v1672, %v1702
    %v1704 = vcombine.high %v1703, %v1703
    %v1713 = vsel %vm210, %v1679, -inf
    %v1714 = vrot.slane %v1713, 4
    %v1715 = vmax.f32 %v1713, %v1714
    %v1716 = vrot.slane %v1715, 2
    %v1717 = vmax.f32 %v1715, %v1716
    %v1718 = vrot.slane %v1717, 1
    %v1719 = vmax.f32 %v1717, %v1718
    %v1720 = vsel %vm210, %v1680, -inf
    %v1721 = vrot.slane %v1720, 4
    %v1722 = vmax.f32 %v1720, %v1721
    %v1723 = vrot.slane %v1722, 2
    %v1724 = vmax.f32 %v1722, %v1723
    %v1725 = vrot.slane %v1724, 1
    %v1726 = vmax.f32 %v1724, %v1725
    %v1727 = vsel %vm210, %v1687, -inf
    %v1728 = vrot.slane %v1727, 4
    %v1729 = vmax.f32 %v1727, %v1728
    %v1730 = vrot.slane %v1729, 2
    %v1731 = vmax.f32 %v1729, %v1730
    %v1732 = vrot.slane %v1731, 1
    %v1733 = vmax.f32 %v1731, %v1732
    %v1734 = vsel %vm210, %v1688, -inf
    %v1735 = vrot.slane %v1734, 4
    %v1736 = vmax.f32 %v1734, %v1735
    %v1737 = vrot.slane %v1736, 2
    %v1738 = vmax.f32 %v1736, %v1737
    %v1739 = vrot.slane %v1738, 1
    %v1740 = vmax.f32 %v1738, %v1739
    %v1741 = vsel %vm210, %v1695, -inf
    %v1742 = vrot.slane %v1741, 4
    %v1743 = vmax.f32 %v1741, %v1742
    %v1744 = vrot.slane %v1743, 2
    %v1745 = vmax.f32 %v1743, %v1744
    %v1746 = vrot.slane %v1745, 1
    %v1747 = vmax.f32 %v1745, %v1746
    %v1748 = vsel %vm210, %v1696, -inf
    %v1749 = vrot.slane %v1748, 4
    %v1750 = vmax.f32 %v1748, %v1749
    %v1751 = vrot.slane %v1750, 2
    %v1752 = vmax.f32 %v1750, %v1751
    %v1753 = vrot.slane %v1752, 1
    %v1754 = vmax.f32 %v1752, %v1753
    %v1755 = vsel %vm210, %v1703, -inf
    %v1756 = vrot.slane %v1755, 4
    %v1757 = vmax.f32 %v1755, %v1756
    %v1758 = vrot.slane %v1757, 2
    %v1759 = vmax.f32 %v1757, %v1758
    %v1760 = vrot.slane %v1759, 1
    %v1761 = vmax.f32 %v1759, %v1760
    %v1762 = vsel %vm210, %v1704, -inf
    %v1763 = vrot.slane %v1762, 4
    %v1764 = vmax.f32 %v1762, %v1763
    %v1765 = vrot.slane %v1764, 2
    %v1766 = vmax.f32 %v1764, %v1765
    %v1767 = vrot.slane %v1766, 1
    %v1768 = vmax.f32 %v1766, %v1767
    %v1773 = vsel %vm643, %v1747, %v1719
    %v1774 = vsel %vm643, %v1754, %v1726
    %v1781 = vsel %vm643, %v1761, %v1733
    %v1782 = vsel %vm643, %v1768, %v1740
    %v1785 = vpack.c.bf16 %v1773, %v1773
    %v1786 = vpack.c.bf16 %v1774, %v1774
    %v1787 = vpack.c.bf16 %v1781, %v1781
    %v1788 = vpack.c.bf16 %v1782, %v1782
    %v1789 = vld [vmem:[#allocation5] sm:$0xff]
    %v1790 = vld [vmem:[#allocation5 + $0x8] sm:$0xff]
    %v1791 = vld [vmem:[#allocation5 + $0x10] sm:$0xff]
    %v1792 = vld [vmem:[#allocation5 + $0x18] sm:$0xff]
    %v1793 = vld [vmem:[#allocation5 + $0x20] sm:$0xff]
    %v1794 = vld [vmem:[#allocation5 + $0x28] sm:$0xff]
    %v1795 = vld [vmem:[#allocation5 + $0x30] sm:$0xff]
    %v1796 = vld [vmem:[#allocation5 + $0x38] sm:$0xff]
    %v1797 = vld [vmem:[#allocation5 + $0x40] sm:$0xff]
    %v1798 = vld [vmem:[#allocation5 + $0x48] sm:$0xff]
    %v1799 = vld [vmem:[#allocation5 + $0x50] sm:$0xff]
    %v1800 = vld [vmem:[#allocation5 + $0x58] sm:$0xff]
    %v1801 = vld [vmem:[#allocation5 + $0x60] sm:$0xff]
    %v1802 = vld [vmem:[#allocation5 + $0x68] sm:$0xff]
    %v1803 = vld [vmem:[#allocation5 + $0x70] sm:$0xff]
    %v1804 = vld [vmem:[#allocation5 + $0x78] sm:$0xff]
    %v1805 = vld [vmem:[#allocation5 + $0x80] sm:$0xff]
    %v1806 = vld [vmem:[#allocation5 + $0x88] sm:$0xff]
    %v1807 = vld [vmem:[#allocation5 + $0x90] sm:$0xff]
    %v1808 = vld [vmem:[#allocation5 + $0x98] sm:$0xff]
    %v1809 = vld [vmem:[#allocation5 + $0xa0] sm:$0xff]
    %v1810 = vld [vmem:[#allocation5 + $0xa8] sm:$0xff]
    %v1811 = vld [vmem:[#allocation5 + $0xb0] sm:$0xff]
    %v1812 = vld [vmem:[#allocation5 + $0xb8] sm:$0xff]
    %v1813 = vld [vmem:[#allocation5 + $0xc0] sm:$0xff]
    %v1814 = vld [vmem:[#allocation5 + $0xc8] sm:$0xff]
    %v1815 = vld [vmem:[#allocation5 + $0xd0] sm:$0xff]
    %v1816 = vld [vmem:[#allocation5 + $0xd8] sm:$0xff]
    %v1817 = vld [vmem:[#allocation5 + $0xe0] sm:$0xff]
    %v1818 = vld [vmem:[#allocation5 + $0xe8] sm:$0xff]
    %v1819 = vld [vmem:[#allocation5 + $0xf0] sm:$0xff]
    %v1820 = vld [vmem:[#allocation5 + $0xf8] sm:$0xff]
    %v1821 = vld [vmem:[#allocation5 + $0x100] sm:$0xff]
    %v1822 = vld [vmem:[#allocation5 + $0x108] sm:$0xff]
    %v1823 = vld [vmem:[#allocation5 + $0x110] sm:$0xff]
    %v1824 = vld [vmem:[#allocation5 + $0x118] sm:$0xff]
    %v1825 = vld [vmem:[#allocation5 + $0x120] sm:$0xff]
    %v1826 = vld [vmem:[#allocation5 + $0x128] sm:$0xff]
    %v1827 = vld [vmem:[#allocation5 + $0x130] sm:$0xff]
    %v1828 = vld [vmem:[#allocation5 + $0x138] sm:$0xff]
    %v1829 = vld [vmem:[#allocation5 + $0x140] sm:$0xff]
    %v1830 = vld [vmem:[#allocation5 + $0x148] sm:$0xff]
    %v1831 = vld [vmem:[#allocation5 + $0x150] sm:$0xff]
    %v1832 = vld [vmem:[#allocation5 + $0x158] sm:$0xff]
    %v1833 = vld [vmem:[#allocation5 + $0x160] sm:$0xff]
    %v1834 = vld [vmem:[#allocation5 + $0x168] sm:$0xff]
    %v1835 = vld [vmem:[#allocation5 + $0x170] sm:$0xff]
    %v1836 = vld [vmem:[#allocation5 + $0x178] sm:$0xff]
    %v1837 = vld [vmem:[#allocation5 + $0x180] sm:$0xff]
    %v1838 = vld [vmem:[#allocation5 + $0x188] sm:$0xff]
    %v1839 = vld [vmem:[#allocation5 + $0x190] sm:$0xff]
    %v1840 = vld [vmem:[#allocation5 + $0x198] sm:$0xff]
    %v1841 = vld [vmem:[#allocation5 + $0x1a0] sm:$0xff]
    %v1842 = vld [vmem:[#allocation5 + $0x1a8] sm:$0xff]
    %v1843 = vld [vmem:[#allocation5 + $0x1b0] sm:$0xff]
    %v1844 = vld [vmem:[#allocation5 + $0x1b8] sm:$0xff]
    %v1845 = vld [vmem:[#allocation5 + $0x1c0] sm:$0xff]
    %v1846 = vld [vmem:[#allocation5 + $0x1c8] sm:$0xff]
    %v1847 = vld [vmem:[#allocation5 + $0x1d0] sm:$0xff]
    %v1848 = vld [vmem:[#allocation5 + $0x1d8] sm:$0xff]
    %v1849 = vld [vmem:[#allocation5 + $0x1e0] sm:$0xff]
    %v1850 = vld [vmem:[#allocation5 + $0x1e8] sm:$0xff]
    %v1851 = vld [vmem:[#allocation5 + $0x1f0] sm:$0xff]
    %v1852 = vld [vmem:[#allocation5 + $0x1f8] sm:$0xff]
    %v1853 = vld [vmem:[#allocation5 + $0x200] sm:$0xff]
    %v1854 = vld [vmem:[#allocation5 + $0x208] sm:$0xff]
    %v1855 = vld [vmem:[#allocation5 + $0x210] sm:$0xff]
    %v1856 = vld [vmem:[#allocation5 + $0x218] sm:$0xff]
    %v1857 = vld [vmem:[#allocation5 + $0x220] sm:$0xff]
    %v1858 = vld [vmem:[#allocation5 + $0x228] sm:$0xff]
    %v1859 = vld [vmem:[#allocation5 + $0x230] sm:$0xff]
    %v1860 = vld [vmem:[#allocation5 + $0x238] sm:$0xff]
    %v1861 = vld [vmem:[#allocation5 + $0x240] sm:$0xff]
    %v1862 = vld [vmem:[#allocation5 + $0x248] sm:$0xff]
    %v1863 = vld [vmem:[#allocation5 + $0x250] sm:$0xff]
    %v1864 = vld [vmem:[#allocation5 + $0x258] sm:$0xff]
    %v1865 = vld [vmem:[#allocation5 + $0x260] sm:$0xff]
    %v1866 = vld [vmem:[#allocation5 + $0x268] sm:$0xff]
    %v1867 = vld [vmem:[#allocation5 + $0x270] sm:$0xff]
    %v1868 = vld [vmem:[#allocation5 + $0x278] sm:$0xff]
    %v1869 = vld [vmem:[#allocation5 + $0x280] sm:$0xff]
    %v1870 = vld [vmem:[#allocation5 + $0x288] sm:$0xff]
    %v1871 = vld [vmem:[#allocation5 + $0x290] sm:$0xff]
    %v1872 = vld [vmem:[#allocation5 + $0x298] sm:$0xff]
    %v1873 = vld [vmem:[#allocation5 + $0x2a0] sm:$0xff]
    %v1874 = vld [vmem:[#allocation5 + $0x2a8] sm:$0xff]
    %v1875 = vld [vmem:[#allocation5 + $0x2b0] sm:$0xff]
    %v1876 = vld [vmem:[#allocation5 + $0x2b8] sm:$0xff]
    %v1877 = vld [vmem:[#allocation5 + $0x2c0] sm:$0xff]
    %v1878 = vld [vmem:[#allocation5 + $0x2c8] sm:$0xff]
    %v1879 = vld [vmem:[#allocation5 + $0x2d0] sm:$0xff]
    %v1880 = vld [vmem:[#allocation5 + $0x2d8] sm:$0xff]
    %v1881 = vld [vmem:[#allocation5 + $0x2e0] sm:$0xff]
    %v1882 = vld [vmem:[#allocation5 + $0x2e8] sm:$0xff]
    %v1883 = vld [vmem:[#allocation5 + $0x2f0] sm:$0xff]
    %v1884 = vld [vmem:[#allocation5 + $0x2f8] sm:$0xff]
    %v1885 = vld [vmem:[#allocation5 + $0x300] sm:$0xff]
    %v1886 = vld [vmem:[#allocation5 + $0x308] sm:$0xff]
    %v1887 = vld [vmem:[#allocation5 + $0x310] sm:$0xff]
    %v1888 = vld [vmem:[#allocation5 + $0x318] sm:$0xff]
    %v1889 = vld [vmem:[#allocation5 + $0x320] sm:$0xff]
    %v1890 = vld [vmem:[#allocation5 + $0x328] sm:$0xff]
    %v1891 = vld [vmem:[#allocation5 + $0x330] sm:$0xff]
    %v1892 = vld [vmem:[#allocation5 + $0x338] sm:$0xff]
    %v1893 = vld [vmem:[#allocation5 + $0x340] sm:$0xff]
    %v1894 = vld [vmem:[#allocation5 + $0x348] sm:$0xff]
    %v1895 = vld [vmem:[#allocation5 + $0x350] sm:$0xff]
    %v1896 = vld [vmem:[#allocation5 + $0x358] sm:$0xff]
    %v1897 = vld [vmem:[#allocation5 + $0x360] sm:$0xff]
    %v1898 = vld [vmem:[#allocation5 + $0x368] sm:$0xff]
    %v1899 = vld [vmem:[#allocation5 + $0x370] sm:$0xff]
    %v1900 = vld [vmem:[#allocation5 + $0x378] sm:$0xff]
    %v1901 = vld [vmem:[#allocation5 + $0x380] sm:$0xff]
    %v1902 = vld [vmem:[#allocation5 + $0x388] sm:$0xff]
    %v1903 = vld [vmem:[#allocation5 + $0x390] sm:$0xff]
    %v1904 = vld [vmem:[#allocation5 + $0x398] sm:$0xff]
    %v1905 = vld [vmem:[#allocation5 + $0x3a0] sm:$0xff]
    %v1906 = vld [vmem:[#allocation5 + $0x3a8] sm:$0xff]
    %v1907 = vld [vmem:[#allocation5 + $0x3b0] sm:$0xff]
    %v1908 = vld [vmem:[#allocation5 + $0x3b8] sm:$0xff]
    %v1909 = vld [vmem:[#allocation5 + $0x3c0] sm:$0xff]
    %v1910 = vld [vmem:[#allocation5 + $0x3c8] sm:$0xff]
    %v1911 = vld [vmem:[#allocation5 + $0x3d0] sm:$0xff]
    %v1912 = vld [vmem:[#allocation5 + $0x3d8] sm:$0xff]
    %v1913 = vld [vmem:[#allocation5 + $0x3e0] sm:$0xff]
    %v1914 = vld [vmem:[#allocation5 + $0x3e8] sm:$0xff]
    %v1915 = vld [vmem:[#allocation5 + $0x3f0] sm:$0xff]
    %v1916 = vld [vmem:[#allocation5 + $0x3f8] sm:$0xff]
    %v1917 = vld [vmem:[%s11] sm:$0xf]
    %v1919 = vlaneseq
    %v1920 = vshrl.u32 %v1919, 7
    %v1921 = vsub.s32 0, %v1920
    %v1922 = vrot.slane %v1917, %v1921
    %v1923 = vlaneseq
    %v1924 = vshrl.u32 %v1923, 7
    %v1925 = vsub.s32 1, %v1924
    %v1926 = vrot.slane %v1917, %v1925
    %v1927 = vlaneseq
    %v1928 = vshrl.u32 %v1927, 7
    %v1929 = vsub.s32 2, %v1928
    %v1930 = vrot.slane %v1917, %v1929
    %v1931 = vlaneseq
    %v1932 = vshrl.u32 %v1931, 7
    %v1933 = vsub.s32 3, %v1932
    %v1934 = vrot.slane %v1917, %v1933
    %v2067 = vunpack.c.l.b16 %v1789
    %v2068 = vunpack.c.h.b16 %v1789
    %v2069 = vunpack.c.l.b16 %v1790
    %v2070 = vunpack.c.h.b16 %v1790
    %v2071 = vunpack.c.l.b16 %v1791
    %v2072 = vunpack.c.h.b16 %v1791
    %v2073 = vunpack.c.l.b16 %v1792
    %v2074 = vunpack.c.h.b16 %v1792
    %v2075 = vunpack.c.l.b16 %v1793
    %v2076 = vunpack.c.h.b16 %v1793
    %v2077 = vunpack.c.l.b16 %v1794
    %v2078 = vunpack.c.h.b16 %v1794
    %v2079 = vunpack.c.l.b16 %v1795
    %v2080 = vunpack.c.h.b16 %v1795
    %v2081 = vunpack.c.l.b16 %v1796
    %v2082 = vunpack.c.h.b16 %v1796
    %v2083 = vunpack.c.l.b16 %v1797
    %v2084 = vunpack.c.h.b16 %v1797
    %v2085 = vunpack.c.l.b16 %v1798
    %v2086 = vunpack.c.h.b16 %v1798
    %v2087 = vunpack.c.l.b16 %v1799
    %v2088 = vunpack.c.h.b16 %v1799
    %v2089 = vunpack.c.l.b16 %v1800
    %v2090 = vunpack.c.h.b16 %v1800
    %v2091 = vunpack.c.l.b16 %v1801
    %v2092 = vunpack.c.h.b16 %v1801
    %v2093 = vunpack.c.l.b16 %v1802
    %v2094 = vunpack.c.h.b16 %v1802
    %v2095 = vunpack.c.l.b16 %v1803
    %v2096 = vunpack.c.h.b16 %v1803
    %v2097 = vunpack.c.l.b16 %v1804
    %v2098 = vunpack.c.h.b16 %v1804
    %v2099 = vunpack.c.l.b16 %v1805
    %v2100 = vunpack.c.h.b16 %v1805
    %v2101 = vunpack.c.l.b16 %v1806
    %v2102 = vunpack.c.h.b16 %v1806
    %v2103 = vunpack.c.l.b16 %v1807
    %v2104 = vunpack.c.h.b16 %v1807
    %v2105 = vunpack.c.l.b16 %v1808
    %v2106 = vunpack.c.h.b16 %v1808
    %v2107 = vunpack.c.l.b16 %v1809
    %v2108 = vunpack.c.h.b16 %v1809
    %v2109 = vunpack.c.l.b16 %v1810
    %v2110 = vunpack.c.h.b16 %v1810
    %v2111 = vunpack.c.l.b16 %v1811
    %v2112 = vunpack.c.h.b16 %v1811
    %v2113 = vunpack.c.l.b16 %v1812
    %v2114 = vunpack.c.h.b16 %v1812
    %v2115 = vunpack.c.l.b16 %v1813
    %v2116 = vunpack.c.h.b16 %v1813
    %v2117 = vunpack.c.l.b16 %v1814
    %v2118 = vunpack.c.h.b16 %v1814
    %v2119 = vunpack.c.l.b16 %v1815
    %v2120 = vunpack.c.h.b16 %v1815
    %v2121 = vunpack.c.l.b16 %v1816
    %v2122 = vunpack.c.h.b16 %v1816
    %v2123 = vunpack.c.l.b16 %v1817
    %v2124 = vunpack.c.h.b16 %v1817
    %v2125 = vunpack.c.l.b16 %v1818
    %v2126 = vunpack.c.h.b16 %v1818
    %v2127 = vunpack.c.l.b16 %v1819
    %v2128 = vunpack.c.h.b16 %v1819
    %v2129 = vunpack.c.l.b16 %v1820
    %v2130 = vunpack.c.h.b16 %v1820
    %v2131 = vunpack.c.l.b16 %v1821
    %v2132 = vunpack.c.h.b16 %v1821
    %v2133 = vunpack.c.l.b16 %v1822
    %v2134 = vunpack.c.h.b16 %v1822
    %v2135 = vunpack.c.l.b16 %v1823
    %v2136 = vunpack.c.h.b16 %v1823
    %v2137 = vunpack.c.l.b16 %v1824
    %v2138 = vunpack.c.h.b16 %v1824
    %v2139 = vunpack.c.l.b16 %v1825
    %v2140 = vunpack.c.h.b16 %v1825
    %v2141 = vunpack.c.l.b16 %v1826
    %v2142 = vunpack.c.h.b16 %v1826
    %v2143 = vunpack.c.l.b16 %v1827
    %v2144 = vunpack.c.h.b16 %v1827
    %v2145 = vunpack.c.l.b16 %v1828
    %v2146 = vunpack.c.h.b16 %v1828
    %v2147 = vunpack.c.l.b16 %v1829
    %v2148 = vunpack.c.h.b16 %v1829
    %v2149 = vunpack.c.l.b16 %v1830
    %v2150 = vunpack.c.h.b16 %v1830
    %v2151 = vunpack.c.l.b16 %v1831
    %v2152 = vunpack.c.h.b16 %v1831
    %v2153 = vunpack.c.l.b16 %v1832
    %v2154 = vunpack.c.h.b16 %v1832
    %v2155 = vunpack.c.l.b16 %v1833
    %v2156 = vunpack.c.h.b16 %v1833
    %v2157 = vunpack.c.l.b16 %v1834
    %v2158 = vunpack.c.h.b16 %v1834
    %v2159 = vunpack.c.l.b16 %v1835
    %v2160 = vunpack.c.h.b16 %v1835
    %v2161 = vunpack.c.l.b16 %v1836
    %v2162 = vunpack.c.h.b16 %v1836
    %v2163 = vunpack.c.l.b16 %v1837
    %v2164 = vunpack.c.h.b16 %v1837
    %v2165 = vunpack.c.l.b16 %v1838
    %v2166 = vunpack.c.h.b16 %v1838
    %v2167 = vunpack.c.l.b16 %v1839
    %v2168 = vunpack.c.h.b16 %v1839
    %v2169 = vunpack.c.l.b16 %v1840
    %v2170 = vunpack.c.h.b16 %v1840
    %v2171 = vunpack.c.l.b16 %v1841
    %v2172 = vunpack.c.h.b16 %v1841
    %v2173 = vunpack.c.l.b16 %v1842
    %v2174 = vunpack.c.h.b16 %v1842
    %v2175 = vunpack.c.l.b16 %v1843
    %v2176 = vunpack.c.h.b16 %v1843
    %v2177 = vunpack.c.l.b16 %v1844
    %v2178 = vunpack.c.h.b16 %v1844
    %v2179 = vunpack.c.l.b16 %v1845
    %v2180 = vunpack.c.h.b16 %v1845
    %v2181 = vunpack.c.l.b16 %v1846
    %v2182 = vunpack.c.h.b16 %v1846
    %v2183 = vunpack.c.l.b16 %v1847
    %v2184 = vunpack.c.h.b16 %v1847
    %v2185 = vunpack.c.l.b16 %v1848
    %v2186 = vunpack.c.h.b16 %v1848
    %v2187 = vunpack.c.l.b16 %v1849
    %v2188 = vunpack.c.h.b16 %v1849
    %v2189 = vunpack.c.l.b16 %v1850
    %v2190 = vunpack.c.h.b16 %v1850
    %v2191 = vunpack.c.l.b16 %v1851
    %v2192 = vunpack.c.h.b16 %v1851
    %v2193 = vunpack.c.l.b16 %v1852
    %v2194 = vunpack.c.h.b16 %v1852
    %v2195 = vunpack.c.l.b16 %v1853
    %v2196 = vunpack.c.h.b16 %v1853
    %v2197 = vunpack.c.l.b16 %v1854
    %v2198 = vunpack.c.h.b16 %v1854
    %v2199 = vunpack.c.l.b16 %v1855
    %v2200 = vunpack.c.h.b16 %v1855
    %v2201 = vunpack.c.l.b16 %v1856
    %v2202 = vunpack.c.h.b16 %v1856
    %v2203 = vunpack.c.l.b16 %v1857
    %v2204 = vunpack.c.h.b16 %v1857
    %v2205 = vunpack.c.l.b16 %v1858
    %v2206 = vunpack.c.h.b16 %v1858
    %v2207 = vunpack.c.l.b16 %v1859
    %v2208 = vunpack.c.h.b16 %v1859
    %v2209 = vunpack.c.l.b16 %v1860
    %v2210 = vunpack.c.h.b16 %v1860
    %v2211 = vunpack.c.l.b16 %v1861
    %v2212 = vunpack.c.h.b16 %v1861
    %v2213 = vunpack.c.l.b16 %v1862
    %v2214 = vunpack.c.h.b16 %v1862
    %v2215 = vunpack.c.l.b16 %v1863
    %v2216 = vunpack.c.h.b16 %v1863
    %v2217 = vunpack.c.l.b16 %v1864
    %v2218 = vunpack.c.h.b16 %v1864
    %v2219 = vunpack.c.l.b16 %v1865
    %v2220 = vunpack.c.h.b16 %v1865
    %v2221 = vunpack.c.l.b16 %v1866
    %v2222 = vunpack.c.h.b16 %v1866
    %v2223 = vunpack.c.l.b16 %v1867
    %v2224 = vunpack.c.h.b16 %v1867
    %v2225 = vunpack.c.l.b16 %v1868
    %v2226 = vunpack.c.h.b16 %v1868
    %v2227 = vunpack.c.l.b16 %v1869
    %v2228 = vunpack.c.h.b16 %v1869
    %v2229 = vunpack.c.l.b16 %v1870
    %v2230 = vunpack.c.h.b16 %v1870
    %v2231 = vunpack.c.l.b16 %v1871
    %v2232 = vunpack.c.h.b16 %v1871
    %v2233 = vunpack.c.l.b16 %v1872
    %v2234 = vunpack.c.h.b16 %v1872
    %v2235 = vunpack.c.l.b16 %v1873
    %v2236 = vunpack.c.h.b16 %v1873
    %v2237 = vunpack.c.l.b16 %v1874
    %v2238 = vunpack.c.h.b16 %v1874
    %v2239 = vunpack.c.l.b16 %v1875
    %v2240 = vunpack.c.h.b16 %v1875
    %v2241 = vunpack.c.l.b16 %v1876
    %v2242 = vunpack.c.h.b16 %v1876
    %v2243 = vunpack.c.l.b16 %v1877
    %v2244 = vunpack.c.h.b16 %v1877
    %v2245 = vunpack.c.l.b16 %v1878
    %v2246 = vunpack.c.h.b16 %v1878
    %v2247 = vunpack.c.l.b16 %v1879
    %v2248 = vunpack.c.h.b16 %v1879
    %v2249 = vunpack.c.l.b16 %v1880
    %v2250 = vunpack.c.h.b16 %v1880
    %v2251 = vunpack.c.l.b16 %v1881
    %v2252 = vunpack.c.h.b16 %v1881
    %v2253 = vunpack.c.l.b16 %v1882
    %v2254 = vunpack.c.h.b16 %v1882
    %v2255 = vunpack.c.l.b16 %v1883
    %v2256 = vunpack.c.h.b16 %v1883
    %v2257 = vunpack.c.l.b16 %v1884
    %v2258 = vunpack.c.h.b16 %v1884
    %v2259 = vunpack.c.l.b16 %v1885
    %v2260 = vunpack.c.h.b16 %v1885
    %v2261 = vunpack.c.l.b16 %v1886
    %v2262 = vunpack.c.h.b16 %v1886
    %v2263 = vunpack.c.l.b16 %v1887
    %v2264 = vunpack.c.h.b16 %v1887
    %v2265 = vunpack.c.l.b16 %v1888
    %v2266 = vunpack.c.h.b16 %v1888
    %v2267 = vunpack.c.l.b16 %v1889
    %v2268 = vunpack.c.h.b16 %v1889
    %v2269 = vunpack.c.l.b16 %v1890
    %v2270 = vunpack.c.h.b16 %v1890
    %v2271 = vunpack.c.l.b16 %v1891
    %v2272 = vunpack.c.h.b16 %v1891
    %v2273 = vunpack.c.l.b16 %v1892
    %v2274 = vunpack.c.h.b16 %v1892
    %v2275 = vunpack.c.l.b16 %v1893
    %v2276 = vunpack.c.h.b16 %v1893
    %v2277 = vunpack.c.l.b16 %v1894
    %v2278 = vunpack.c.h.b16 %v1894
    %v2279 = vunpack.c.l.b16 %v1895
    %v2280 = vunpack.c.h.b16 %v1895
    %v2281 = vunpack.c.l.b16 %v1896
    %v2282 = vunpack.c.h.b16 %v1896
    %v2283 = vunpack.c.l.b16 %v1897
    %v2284 = vunpack.c.h.b16 %v1897
    %v2285 = vunpack.c.l.b16 %v1898
    %v2286 = vunpack.c.h.b16 %v1898
    %v2287 = vunpack.c.l.b16 %v1899
    %v2288 = vunpack.c.h.b16 %v1899
    %v2289 = vunpack.c.l.b16 %v1900
    %v2290 = vunpack.c.h.b16 %v1900
    %v2291 = vunpack.c.l.b16 %v1901
    %v2292 = vunpack.c.h.b16 %v1901
    %v2293 = vunpack.c.l.b16 %v1902
    %v2294 = vunpack.c.h.b16 %v1902
    %v2295 = vunpack.c.l.b16 %v1903
    %v2296 = vunpack.c.h.b16 %v1903
    %v2297 = vunpack.c.l.b16 %v1904
    %v2298 = vunpack.c.h.b16 %v1904
    %v2299 = vunpack.c.l.b16 %v1905
    %v2300 = vunpack.c.h.b16 %v1905
    %v2301 = vunpack.c.l.b16 %v1906
    %v2302 = vunpack.c.h.b16 %v1906
    %v2303 = vunpack.c.l.b16 %v1907
    %v2304 = vunpack.c.h.b16 %v1907
    %v2305 = vunpack.c.l.b16 %v1908
    %v2306 = vunpack.c.h.b16 %v1908
    %v2307 = vunpack.c.l.b16 %v1909
    %v2308 = vunpack.c.h.b16 %v1909
    %v2309 = vunpack.c.l.b16 %v1910
    %v2310 = vunpack.c.h.b16 %v1910
    %v2311 = vunpack.c.l.b16 %v1911
    %v2312 = vunpack.c.h.b16 %v1911
    %v2313 = vunpack.c.l.b16 %v1912
    %v2314 = vunpack.c.h.b16 %v1912
    %v2315 = vunpack.c.l.b16 %v1913
    %v2316 = vunpack.c.h.b16 %v1913
    %v2317 = vunpack.c.l.b16 %v1914
    %v2318 = vunpack.c.h.b16 %v1914
    %v2319 = vunpack.c.l.b16 %v1915
    %v2320 = vunpack.c.h.b16 %v1915
    %v2321 = vunpack.c.l.b16 %v1916
    %v2322 = vunpack.c.h.b16 %v1916
    %v2323 = vpack.c.b16 %v2071, %v2067
    %v2324 = vpack.c.b16 %v2072, %v2068
    %v2325 = vpack.c.b16 %v2073, %v2069
    %v2326 = vpack.c.b16 %v2074, %v2070
    %v2327 = vpack.c.b16 %v2079, %v2075
    %v2328 = vpack.c.b16 %v2080, %v2076
    %v2329 = vpack.c.b16 %v2081, %v2077
    %v2330 = vpack.c.b16 %v2082, %v2078
    %v2331 = vpack.c.b16 %v2087, %v2083
    %v2332 = vpack.c.b16 %v2088, %v2084
    %v2333 = vpack.c.b16 %v2089, %v2085
    %v2334 = vpack.c.b16 %v2090, %v2086
    %v2335 = vpack.c.b16 %v2095, %v2091
    %v2336 = vpack.c.b16 %v2096, %v2092
    %v2337 = vpack.c.b16 %v2097, %v2093
    %v2338 = vpack.c.b16 %v2098, %v2094
    %v2339 = vpack.c.b16 %v2103, %v2099
    %v2340 = vpack.c.b16 %v2104, %v2100
    %v2341 = vpack.c.b16 %v2105, %v2101
    %v2342 = vpack.c.b16 %v2106, %v2102
    %v2343 = vpack.c.b16 %v2111, %v2107
    %v2344 = vpack.c.b16 %v2112, %v2108
    %v2345 = vpack.c.b16 %v2113, %v2109
    %v2346 = vpack.c.b16 %v2114, %v2110
    %v2347 = vpack.c.b16 %v2119, %v2115
    %v2348 = vpack.c.b16 %v2120, %v2116
    %v2349 = vpack.c.b16 %v2121, %v2117
    %v2350 = vpack.c.b16 %v2122, %v2118
    %v2351 = vpack.c.b16 %v2127, %v2123
    %v2352 = vpack.c.b16 %v2128, %v2124
    %v2353 = vpack.c.b16 %v2129, %v2125
    %v2354 = vpack.c.b16 %v2130, %v2126
    %v2355 = vpack.c.b16 %v2135, %v2131
    %v2356 = vpack.c.b16 %v2136, %v2132
    %v2357 = vpack.c.b16 %v2137, %v2133
    %v2358 = vpack.c.b16 %v2138, %v2134
    %v2359 = vpack.c.b16 %v2143, %v2139
    %v2360 = vpack.c.b16 %v2144, %v2140
    %v2361 = vpack.c.b16 %v2145, %v2141
    %v2362 = vpack.c.b16 %v2146, %v2142
    %v2363 = vpack.c.b16 %v2151, %v2147
    %v2364 = vpack.c.b16 %v2152, %v2148
    %v2365 = vpack.c.b16 %v2153, %v2149
    %v2366 = vpack.c.b16 %v2154, %v2150
    %v2367 = vpack.c.b16 %v2159, %v2155
    %v2368 = vpack.c.b16 %v2160, %v2156
    %v2369 = vpack.c.b16 %v2161, %v2157
    %v2370 = vpack.c.b16 %v2162, %v2158
    %v2371 = vpack.c.b16 %v2167, %v2163
    %v2372 = vpack.c.b16 %v2168, %v2164
    %v2373 = vpack.c.b16 %v2169, %v2165
    %v2374 = vpack.c.b16 %v2170, %v2166
    %v2375 = vpack.c.b16 %v2175, %v2171
    %v2376 = vpack.c.b16 %v2176, %v2172
    %v2377 = vpack.c.b16 %v2177, %v2173
    %v2378 = vpack.c.b16 %v2178, %v2174
    %v2379 = vpack.c.b16 %v2183, %v2179
    %v2380 = vpack.c.b16 %v2184, %v2180
    %v2381 = vpack.c.b16 %v2185, %v2181
    %v2382 = vpack.c.b16 %v2186, %v2182
    %v2383 = vpack.c.b16 %v2191, %v2187
    %v2384 = vpack.c.b16 %v2192, %v2188
    %v2385 = vpack.c.b16 %v2193, %v2189
    %v2386 = vpack.c.b16 %v2194, %v2190
    %v2387 = vpack.c.b16 %v2199, %v2195
    %v2388 = vpack.c.b16 %v2200, %v2196
    %v2389 = vpack.c.b16 %v2201, %v2197
    %v2390 = vpack.c.b16 %v2202, %v2198
    %v2391 = vpack.c.b16 %v2207, %v2203
    %v2392 = vpack.c.b16 %v2208, %v2204
    %v2393 = vpack.c.b16 %v2209, %v2205
    %v2394 = vpack.c.b16 %v2210, %v2206
    %v2395 = vpack.c.b16 %v2215, %v2211
    %v2396 = vpack.c.b16 %v2216, %v2212
    %v2397 = vpack.c.b16 %v2217, %v2213
    %v2398 = vpack.c.b16 %v2218, %v2214
    %v2399 = vpack.c.b16 %v2223, %v2219
    %v2400 = vpack.c.b16 %v2224, %v2220
    %v2401 = vpack.c.b16 %v2225, %v2221
    %v2402 = vpack.c.b16 %v2226, %v2222
    %v2403 = vpack.c.b16 %v2231, %v2227
    %v2404 = vpack.c.b16 %v2232, %v2228
    %v2405 = vpack.c.b16 %v2233, %v2229
    %v2406 = vpack.c.b16 %v2234, %v2230
    %v2407 = vpack.c.b16 %v2239, %v2235
    %v2408 = vpack.c.b16 %v2240, %v2236
    %v2409 = vpack.c.b16 %v2241, %v2237
    %v2410 = vpack.c.b16 %v2242, %v2238
    %v2411 = vpack.c.b16 %v2247, %v2243
    %v2412 = vpack.c.b16 %v2248, %v2244
    %v2413 = vpack.c.b16 %v2249, %v2245
    %v2414 = vpack.c.b16 %v2250, %v2246
    %v2415 = vpack.c.b16 %v2255, %v2251
    %v2416 = vpack.c.b16 %v2256, %v2252
    %v2417 = vpack.c.b16 %v2257, %v2253
    %v2418 = vpack.c.b16 %v2258, %v2254
    %v2419 = vpack.c.b16 %v2263, %v2259
    %v2420 = vpack.c.b16 %v2264, %v2260
    %v2421 = vpack.c.b16 %v2265, %v2261
    %v2422 = vpack.c.b16 %v2266, %v2262
    %v2423 = vpack.c.b16 %v2271, %v2267
    %v2424 = vpack.c.b16 %v2272, %v2268
    %v2425 = vpack.c.b16 %v2273, %v2269
    %v2426 = vpack.c.b16 %v2274, %v2270
    %v2427 = vpack.c.b16 %v2279, %v2275
    %v2428 = vpack.c.b16 %v2280, %v2276
    %v2429 = vpack.c.b16 %v2281, %v2277
    %v2430 = vpack.c.b16 %v2282, %v2278
    %v2431 = vpack.c.b16 %v2287, %v2283
    %v2432 = vpack.c.b16 %v2288, %v2284
    %v2433 = vpack.c.b16 %v2289, %v2285
    %v2434 = vpack.c.b16 %v2290, %v2286
    %v2435 = vpack.c.b16 %v2295, %v2291
    %v2436 = vpack.c.b16 %v2296, %v2292
    %v2437 = vpack.c.b16 %v2297, %v2293
    %v2438 = vpack.c.b16 %v2298, %v2294
    %v2439 = vpack.c.b16 %v2303, %v2299
    %v2440 = vpack.c.b16 %v2304, %v2300
    %v2441 = vpack.c.b16 %v2305, %v2301
    %v2442 = vpack.c.b16 %v2306, %v2302
    %v2443 = vpack.c.b16 %v2311, %v2307
    %v2444 = vpack.c.b16 %v2312, %v2308
    %v2445 = vpack.c.b16 %v2313, %v2309
    %v2446 = vpack.c.b16 %v2314, %v2310
    %v2447 = vpack.c.b16 %v2319, %v2315
    %v2448 = vpack.c.b16 %v2320, %v2316
    %v2449 = vpack.c.b16 %v2321, %v2317
    %v2450 = vpack.c.b16 %v2322, %v2318
    %2579 = vmatprep.subr.bf16.mxu0 %v2352
    %2580 = vmatpush1.bf16.msra.mxu0 %v2351
    %2581 = vmatprep.subr.bf16.mxu0 %v2348
    %2582 = vmatpush1.bf16.msra.mxu0 %v2347
    %2583 = vmatprep.subr.bf16.mxu0 %v2344
    %2584 = vmatpush1.bf16.msra.mxu0 %v2343
    %2585 = vmatprep.subr.bf16.mxu0 %v2340
    %2586 = vmatpush1.bf16.msra.mxu0 %v2339
    %2587 = vmatprep.subr.bf16.mxu0 %v2336
    %2588 = vmatpush1.bf16.msra.mxu0 %v2335
    %2589 = vmatprep.subr.bf16.mxu0 %v2332
    %2590 = vmatpush1.bf16.msra.mxu0 %v2331
    %2591 = vmatprep.subr.bf16.mxu0 %v2328
    %2592 = vmatpush1.bf16.msra.mxu0 %v2327
    %2593 = vmatprep.subr.bf16.mxu0 %v2324
    %2594 = vmatpush1.bf16.msra.mxu0 %v2323
    %2595 = vmatprep.subr.bf16.mxu0 %v2384
    %2596 = vmatpush2.bf16.msra.mxu0 %v2383
    %2597 = vmatprep.subr.bf16.mxu0 %v2380
    %2598 = vmatpush2.bf16.msra.mxu0 %v2379
    %2599 = vmatprep.subr.bf16.mxu0 %v2376
    %2600 = vmatpush2.bf16.msra.mxu0 %v2375
    %2601 = vmatprep.subr.bf16.mxu0 %v2372
    %2602 = vmatpush2.bf16.msra.mxu0 %v2371
    %2603 = vmatprep.subr.bf16.mxu0 %v2368
    %2604 = vmatpush2.bf16.msra.mxu0 %v2367
    %2605 = vmatprep.subr.bf16.mxu0 %v2364
    %2606 = vmatpush2.bf16.msra.mxu0 %v2363
    %2607 = vmatprep.subr.bf16.mxu0 %v2360
    %2608 = vmatpush2.bf16.msra.mxu0 %v2359
    %2609 = vmatprep.subr.bf16.mxu0 %v2356
    %2610 = vmatpush2.bf16.msra.mxu0 %v2355
    %2611 = vmatprep.mubr.bf16.mxu0 %v1786
    %2612 = vmatmul.mubr.bf16.gmra.mxu0 %v1785
    %v2613 = vpop.f32.mrf.mxu0
    %v2614 = vadd.f32 %v1922, %v2613
    %v2615 = vpop.f32.mrf.mxu0
    %v2616 = vadd.f32 %v1926, %v2615
    %v2617 = vpop.f32.mrf.mxu0
    %v2618 = vpop.f32.mrf.mxu0
    %2619 = vdwg.mxu0
    %2620 = vmatprep.subr.bf16.mxu0 %v2416
    %2621 = vmatpush1.bf16.msra.mxu0 %v2415
    %2622 = vmatprep.subr.bf16.mxu0 %v2412
    %2623 = vmatpush1.bf16.msra.mxu0 %v2411
    %2624 = vmatprep.subr.bf16.mxu0 %v2408
    %2625 = vmatpush1.bf16.msra.mxu0 %v2407
    %2626 = vmatprep.subr.bf16.mxu0 %v2404
    %2627 = vmatpush1.bf16.msra.mxu0 %v2403
    %2628 = vmatprep.subr.bf16.mxu0 %v2400
    %2629 = vmatpush1.bf16.msra.mxu0 %v2399
    %2630 = vmatprep.subr.bf16.mxu0 %v2396
    %2631 = vmatpush1.bf16.msra.mxu0 %v2395
    %2632 = vmatprep.subr.bf16.mxu0 %v2392
    %2633 = vmatpush1.bf16.msra.mxu0 %v2391
    %2634 = vmatprep.subr.bf16.mxu0 %v2388
    %2635 = vmatpush1.bf16.msra.mxu0 %v2387
    %2636 = vmatprep.subr.bf16.mxu0 %v2448
    %2637 = vmatpush2.bf16.msra.mxu0 %v2447
    %2638 = vmatprep.subr.bf16.mxu0 %v2444
    %2639 = vmatpush2.bf16.msra.mxu0 %v2443
    %2640 = vmatprep.subr.bf16.mxu0 %v2440
    %2641 = vmatpush2.bf16.msra.mxu0 %v2439
    %2642 = vmatprep.subr.bf16.mxu0 %v2436
    %2643 = vmatpush2.bf16.msra.mxu0 %v2435
    %2644 = vmatprep.subr.bf16.mxu0 %v2432
    %2645 = vmatpush2.bf16.msra.mxu0 %v2431
    %2646 = vmatprep.subr.bf16.mxu0 %v2428
    %2647 = vmatpush2.bf16.msra.mxu0 %v2427
    %2648 = vmatprep.subr.bf16.mxu0 %v2424
    %2649 = vmatpush2.bf16.msra.mxu0 %v2423
    %2650 = vmatprep.subr.bf16.mxu0 %v2420
    %2651 = vmatpush2.bf16.msra.mxu0 %v2419
    %2652 = vmatprep.mubr.bf16.mxu0 %v1788
    %2653 = vmatmul.mubr.bf16.gmra.mxu0 %v1787
    %v2654 = vpop.f32.mrf.mxu0
    %v2655 = vadd.f32 %v2614, %v2654
    %v2656 = vpop.f32.mrf.mxu0
    %v2657 = vadd.f32 %v2616, %v2656
    %v2658 = vpop.f32.mrf.mxu0
    %v2659 = vpop.f32.mrf.mxu0
    %2660 = vdwg.mxu0
    %2661 = vmatprep.subr.bf16.mxu0 %v2354
    %2662 = vmatpush1.bf16.msra.mxu0 %v2353
    %2663 = vmatprep.subr.bf16.mxu0 %v2350
    %2664 = vmatpush1.bf16.msra.mxu0 %v2349
    %2665 = vmatprep.subr.bf16.mxu0 %v2346
    %2666 = vmatpush1.bf16.msra.mxu0 %v2345
    %2667 = vmatprep.subr.bf16.mxu0 %v2342
    %2668 = vmatpush1.bf16.msra.mxu0 %v2341
    %2669 = vmatprep.subr.bf16.mxu0 %v2338
    %2670 = vmatpush1.bf16.msra.mxu0 %v2337
    %2671 = vmatprep.subr.bf16.mxu0 %v2334
    %2672 = vmatpush1.bf16.msra.mxu0 %v2333
    %2673 = vmatprep.subr.bf16.mxu0 %v2330
    %2674 = vmatpush1.bf16.msra.mxu0 %v2329
    %2675 = vmatprep.subr.bf16.mxu0 %v2326
    %2676 = vmatpush1.bf16.msra.mxu0 %v2325
    %2677 = vmatprep.subr.bf16.mxu0 %v2386
    %2678 = vmatpush2.bf16.msra.mxu0 %v2385
    %2679 = vmatprep.subr.bf16.mxu0 %v2382
    %2680 = vmatpush2.bf16.msra.mxu0 %v2381
    %2681 = vmatprep.subr.bf16.mxu0 %v2378
    %2682 = vmatpush2.bf16.msra.mxu0 %v2377
    %2683 = vmatprep.subr.bf16.mxu0 %v2374
    %2684 = vmatpush2.bf16.msra.mxu0 %v2373
    %2685 = vmatprep.subr.bf16.mxu0 %v2370
    %2686 = vmatpush2.bf16.msra.mxu0 %v2369
    %2687 = vmatprep.subr.bf16.mxu0 %v2366
    %2688 = vmatpush2.bf16.msra.mxu0 %v2365
    %2689 = vmatprep.subr.bf16.mxu0 %v2362
    %2690 = vmatpush2.bf16.msra.mxu0 %v2361
    %2691 = vmatprep.subr.bf16.mxu0 %v2358
    %2692 = vmatpush2.bf16.msra.mxu0 %v2357
    %2693 = vmatprep.mubr.bf16.mxu0 %v1786
    %2694 = vmatmul.mubr.bf16.gmra.mxu0 %v1785
    %v2695 = vpop.f32.mrf.mxu0
    %v2696 = vadd.f32 %v1930, %v2695
    %v2697 = vpop.f32.mrf.mxu0
    %v2698 = vadd.f32 %v1934, %v2697
    %v2699 = vpop.f32.mrf.mxu0
    %v2700 = vpop.f32.mrf.mxu0
    %2701 = vdwg.mxu0
    %2702 = vmatprep.subr.bf16.mxu0 %v2418
    %2703 = vmatpush1.bf16.msra.mxu0 %v2417
    %2704 = vmatprep.subr.bf16.mxu0 %v2414
    %2705 = vmatpush1.bf16.msra.mxu0 %v2413
    %2706 = vmatprep.subr.bf16.mxu0 %v2410
    %2707 = vmatpush1.bf16.msra.mxu0 %v2409
    %2708 = vmatprep.subr.bf16.mxu0 %v2406
    %2709 = vmatpush1.bf16.msra.mxu0 %v2405
    %2710 = vmatprep.subr.bf16.mxu0 %v2402
    %2711 = vmatpush1.bf16.msra.mxu0 %v2401
    %2712 = vmatprep.subr.bf16.mxu0 %v2398
    %2713 = vmatpush1.bf16.msra.mxu0 %v2397
    %2714 = vmatprep.subr.bf16.mxu0 %v2394
    %2715 = vmatpush1.bf16.msra.mxu0 %v2393
    %2716 = vmatprep.subr.bf16.mxu0 %v2390
    %2717 = vmatpush1.bf16.msra.mxu0 %v2389
    %2718 = vmatprep.subr.bf16.mxu0 %v2450
    %2719 = vmatpush2.bf16.msra.mxu0 %v2449
    %2720 = vmatprep.subr.bf16.mxu0 %v2446
    %2721 = vmatpush2.bf16.msra.mxu0 %v2445
    %2722 = vmatprep.subr.bf16.mxu0 %v2442
    %2723 = vmatpush2.bf16.msra.mxu0 %v2441
    %2724 = vmatprep.subr.bf16.mxu0 %v2438
    %2725 = vmatpush2.bf16.msra.mxu0 %v2437
    %2726 = vmatprep.subr.bf16.mxu0 %v2434
    %2727 = vmatpush2.bf16.msra.mxu0 %v2433
    %2728 = vmatprep.subr.bf16.mxu0 %v2430
    %2729 = vmatpush2.bf16.msra.mxu0 %v2429
    %2730 = vmatprep.subr.bf16.mxu0 %v2426
    %2731 = vmatpush2.bf16.msra.mxu0 %v2425
    %2732 = vmatprep.subr.bf16.mxu0 %v2422
    %2733 = vmatpush2.bf16.msra.mxu0 %v2421
    %2734 = vmatprep.mubr.bf16.mxu0 %v1788
    %2735 = vmatmul.mubr.bf16.gmra.mxu0 %v1787
    %v2736 = vpop.f32.mrf.mxu0
    %v2737 = vadd.f32 %v2696, %v2736
    %v2738 = vpop.f32.mrf.mxu0
    %v2739 = vadd.f32 %v2698, %v2738
    %v2740 = vpop.f32.mrf.mxu0
    %v2741 = vpop.f32.mrf.mxu0
    %2742 = vdwg.mxu0
    %v2743 = vpack.c.bf16 %v2655, %v2655
    %v2744 = vpack.c.bf16 %v2657, %v2657
    %v2745 = vpack.c.bf16 %v2737, %v2737
    %v2746 = vpack.c.bf16 %v2739, %v2739
    %v2747 = vld [vmem:[%s12] sm:$0xf]
    %v2748 = vld [vmem:[%s12 + $0x4] sm:$0xf]
    %v2749 = vld [vmem:[%s12 + $0x8] sm:$0xf]
    %v2750 = vld [vmem:[%s12 + $0xc] sm:$0xf]
    %v2751 = vld [vmem:[%s12 + $0x10] sm:$0xf]
    %v2752 = vld [vmem:[%s12 + $0x14] sm:$0xf]
    %v2753 = vld [vmem:[%s12 + $0x18] sm:$0xf]
    %v2754 = vld [vmem:[%s12 + $0x1c] sm:$0xf]
    %v2755 = vld [vmem:[%s12 + $0x20] sm:$0xf]
    %v2756 = vld [vmem:[%s12 + $0x24] sm:$0xf]
    %v2757 = vld [vmem:[%s12 + $0x28] sm:$0xf]
    %v2758 = vld [vmem:[%s12 + $0x2c] sm:$0xf]
    %v2759 = vld [vmem:[%s12 + $0x30] sm:$0xf]
    %v2760 = vld [vmem:[%s12 + $0x34] sm:$0xf]
    %v2761 = vld [vmem:[%s12 + $0x38] sm:$0xf]
    %v2762 = vld [vmem:[%s12 + $0x3c] sm:$0xf]
    %v2763 = vld [vmem:[%s12 + $0x40] sm:$0xf]
    %v2764 = vld [vmem:[%s12 + $0x44] sm:$0xf]
    %v2765 = vld [vmem:[%s12 + $0x48] sm:$0xf]
    %v2766 = vld [vmem:[%s12 + $0x4c] sm:$0xf]
    %v2767 = vld [vmem:[%s12 + $0x50] sm:$0xf]
    %v2768 = vld [vmem:[%s12 + $0x54] sm:$0xf]
    %v2769 = vld [vmem:[%s12 + $0x58] sm:$0xf]
    %v2770 = vld [vmem:[%s12 + $0x5c] sm:$0xf]
    %v2771 = vld [vmem:[%s12 + $0x60] sm:$0xf]
    %v2772 = vld [vmem:[%s12 + $0x64] sm:$0xf]
    %v2773 = vld [vmem:[%s12 + $0x68] sm:$0xf]
    %v2774 = vld [vmem:[%s12 + $0x6c] sm:$0xf]
    %v2775 = vld [vmem:[%s12 + $0x70] sm:$0xf]
    %v2776 = vld [vmem:[%s12 + $0x74] sm:$0xf]
    %v2777 = vld [vmem:[%s12 + $0x78] sm:$0xf]
    %v2778 = vld [vmem:[%s12 + $0x7c] sm:$0xf]
    %v2779 = vld [vmem:[%s12 + $0x80] sm:$0xf]
    %v2780 = vld [vmem:[%s12 + $0x84] sm:$0xf]
    %v2781 = vld [vmem:[%s12 + $0x88] sm:$0xf]
    %v2782 = vld [vmem:[%s12 + $0x8c] sm:$0xf]
    %v2783 = vld [vmem:[%s12 + $0x90] sm:$0xf]
    %v2784 = vld [vmem:[%s12 + $0x94] sm:$0xf]
    %v2785 = vld [vmem:[%s12 + $0x98] sm:$0xf]
    %v2786 = vld [vmem:[%s12 + $0x9c] sm:$0xf]
    %v2787 = vld [vmem:[%s12 + $0xa0] sm:$0xf]
    %v2788 = vld [vmem:[%s12 + $0xa4] sm:$0xf]
    %v2789 = vld [vmem:[%s12 + $0xa8] sm:$0xf]
    %v2790 = vld [vmem:[%s12 + $0xac] sm:$0xf]
    %v2791 = vld [vmem:[%s12 + $0xb0] sm:$0xf]
    %v2792 = vld [vmem:[%s12 + $0xb4] sm:$0xf]
    %v2793 = vld [vmem:[%s12 + $0xb8] sm:$0xf]
    %v2794 = vld [vmem:[%s12 + $0xbc] sm:$0xf]
    %v2795 = vld [vmem:[%s12 + $0xc0] sm:$0xf]
    %v2796 = vld [vmem:[%s12 + $0xc4] sm:$0xf]
    %v2797 = vld [vmem:[%s12 + $0xc8] sm:$0xf]
    %v2798 = vld [vmem:[%s12 + $0xcc] sm:$0xf]
    %v2799 = vld [vmem:[%s12 + $0xd0] sm:$0xf]
    %v2800 = vld [vmem:[%s12 + $0xd4] sm:$0xf]
    %v2801 = vld [vmem:[%s12 + $0xd8] sm:$0xf]
    %v2802 = vld [vmem:[%s12 + $0xdc] sm:$0xf]
    %v2803 = vld [vmem:[%s12 + $0xe0] sm:$0xf]
    %v2804 = vld [vmem:[%s12 + $0xe4] sm:$0xf]
    %v2805 = vld [vmem:[%s12 + $0xe8] sm:$0xf]
    %v2806 = vld [vmem:[%s12 + $0xec] sm:$0xf]
    %v2807 = vld [vmem:[%s12 + $0xf0] sm:$0xf]
    %v2808 = vld [vmem:[%s12 + $0xf4] sm:$0xf]
    %v2809 = vld [vmem:[%s12 + $0xf8] sm:$0xf]
    %v2810 = vld [vmem:[%s12 + $0xfc] sm:$0xf]
    %v2811 = vld [vmem:[%s13] sm:$0x1]
    %v2813 = vlaneseq
    %v2814 = vshrl.u32 %v2813, 7
    %v2815 = vsub.s32 0, %v2814
    %v2816 = vrot.slane %v2811, %v2815
    %v2882 = vunpack.c.l.b16 %v2747
    %v2883 = vunpack.c.l.b16 %v2748
    %v2884 = vunpack.c.l.b16 %v2749
    %v2885 = vunpack.c.l.b16 %v2750
    %v2886 = vunpack.c.l.b16 %v2751
    %v2887 = vunpack.c.l.b16 %v2752
    %v2888 = vunpack.c.l.b16 %v2753
    %v2889 = vunpack.c.l.b16 %v2754
    %v2890 = vunpack.c.l.b16 %v2755
    %v2891 = vunpack.c.l.b16 %v2756
    %v2892 = vunpack.c.l.b16 %v2757
    %v2893 = vunpack.c.l.b16 %v2758
    %v2894 = vunpack.c.l.b16 %v2759
    %v2895 = vunpack.c.l.b16 %v2760
    %v2896 = vunpack.c.l.b16 %v2761
    %v2897 = vunpack.c.l.b16 %v2762
    %v2898 = vunpack.c.l.b16 %v2763
    %v2899 = vunpack.c.l.b16 %v2764
    %v2900 = vunpack.c.l.b16 %v2765
    %v2901 = vunpack.c.l.b16 %v2766
    %v2902 = vunpack.c.l.b16 %v2767
    %v2903 = vunpack.c.l.b16 %v2768
    %v2904 = vunpack.c.l.b16 %v2769
    %v2905 = vunpack.c.l.b16 %v2770
    %v2906 = vunpack.c.l.b16 %v2771
    %v2907 = vunpack.c.l.b16 %v2772
    %v2908 = vunpack.c.l.b16 %v2773
    %v2909 = vunpack.c.l.b16 %v2774
    %v2910 = vunpack.c.l.b16 %v2775
    %v2911 = vunpack.c.l.b16 %v2776
    %v2912 = vunpack.c.l.b16 %v2777
    %v2913 = vunpack.c.l.b16 %v2778
    %v2914 = vunpack.c.l.b16 %v2779
    %v2915 = vunpack.c.l.b16 %v2780
    %v2916 = vunpack.c.l.b16 %v2781
    %v2917 = vunpack.c.l.b16 %v2782
    %v2918 = vunpack.c.l.b16 %v2783
    %v2919 = vunpack.c.l.b16 %v2784
    %v2920 = vunpack.c.l.b16 %v2785
    %v2921 = vunpack.c.l.b16 %v2786
    %v2922 = vunpack.c.l.b16 %v2787
    %v2923 = vunpack.c.l.b16 %v2788
    %v2924 = vunpack.c.l.b16 %v2789
    %v2925 = vunpack.c.l.b16 %v2790
    %v2926 = vunpack.c.l.b16 %v2791
    %v2927 = vunpack.c.l.b16 %v2792
    %v2928 = vunpack.c.l.b16 %v2793
    %v2929 = vunpack.c.l.b16 %v2794
    %v2930 = vunpack.c.l.b16 %v2795
    %v2931 = vunpack.c.l.b16 %v2796
    %v2932 = vunpack.c.l.b16 %v2797
    %v2933 = vunpack.c.l.b16 %v2798
    %v2934 = vunpack.c.l.b16 %v2799
    %v2935 = vunpack.c.l.b16 %v2800
    %v2936 = vunpack.c.l.b16 %v2801
    %v2937 = vunpack.c.l.b16 %v2802
    %v2938 = vunpack.c.l.b16 %v2803
    %v2939 = vunpack.c.l.b16 %v2804
    %v2940 = vunpack.c.l.b16 %v2805
    %v2941 = vunpack.c.l.b16 %v2806
    %v2942 = vunpack.c.l.b16 %v2807
    %v2943 = vunpack.c.l.b16 %v2808
    %v2944 = vunpack.c.l.b16 %v2809
    %v2945 = vunpack.c.l.b16 %v2810
    %v2946 = vpack.c.b16 %v2883, %v2882
    %v2947 = vpack.c.b16 %v2885, %v2884
    %v2948 = vpack.c.b16 %v2887, %v2886
    %v2949 = vpack.c.b16 %v2889, %v2888
    %v2950 = vpack.c.b16 %v2891, %v2890
    %v2951 = vpack.c.b16 %v2893, %v2892
    %v2952 = vpack.c.b16 %v2895, %v2894
    %v2953 = vpack.c.b16 %v2897, %v2896
    %v2954 = vpack.c.b16 %v2899, %v2898
    %v2955 = vpack.c.b16 %v2901, %v2900
    %v2956 = vpack.c.b16 %v2903, %v2902
    %v2957 = vpack.c.b16 %v2905, %v2904
    %v2958 = vpack.c.b16 %v2907, %v2906
    %v2959 = vpack.c.b16 %v2909, %v2908
    %v2960 = vpack.c.b16 %v2911, %v2910
    %v2961 = vpack.c.b16 %v2913, %v2912
    %v2962 = vpack.c.b16 %v2915, %v2914
    %v2963 = vpack.c.b16 %v2917, %v2916
    %v2964 = vpack.c.b16 %v2919, %v2918
    %v2965 = vpack.c.b16 %v2921, %v2920
    %v2966 = vpack.c.b16 %v2923, %v2922
    %v2967 = vpack.c.b16 %v2925, %v2924
    %v2968 = vpack.c.b16 %v2927, %v2926
    %v2969 = vpack.c.b16 %v2929, %v2928
    %v2970 = vpack.c.b16 %v2931, %v2930
    %v2971 = vpack.c.b16 %v2933, %v2932
    %v2972 = vpack.c.b16 %v2935, %v2934
    %v2973 = vpack.c.b16 %v2937, %v2936
    %v2974 = vpack.c.b16 %v2939, %v2938
    %v2975 = vpack.c.b16 %v2941, %v2940
    %v2976 = vpack.c.b16 %v2943, %v2942
    %v2977 = vpack.c.b16 %v2945, %v2944
    %3010 = vmatprep.subr.bf16.mxu0 0
    %3011 = vmatpush1.bf16.msra.mxu0 %v2953
    %3012 = vmatprep.subr.bf16.mxu0 0
    %3013 = vmatpush1.bf16.msra.mxu0 %v2952
    %3014 = vmatprep.subr.bf16.mxu0 0
    %3015 = vmatpush1.bf16.msra.mxu0 %v2951
    %3016 = vmatprep.subr.bf16.mxu0 0
    %3017 = vmatpush1.bf16.msra.mxu0 %v2950
    %3018 = vmatprep.subr.bf16.mxu0 0
    %3019 = vmatpush1.bf16.msra.mxu0 %v2949
    %3020 = vmatprep.subr.bf16.mxu0 0
    %3021 = vmatpush1.bf16.msra.mxu0 %v2948
    %3022 = vmatprep.subr.bf16.mxu0 0
    %3023 = vmatpush1.bf16.msra.mxu0 %v2947
    %3024 = vmatprep.subr.bf16.mxu0 0
    %3025 = vmatpush1.bf16.msra.mxu0 %v2946
    %3026 = vmatprep.subr.bf16.mxu0 0
    %3027 = vmatpush2.bf16.msra.mxu0 %v2961
    %3028 = vmatprep.subr.bf16.mxu0 0
    %3029 = vmatpush2.bf16.msra.mxu0 %v2960
    %3030 = vmatprep.subr.bf16.mxu0 0
    %3031 = vmatpush2.bf16.msra.mxu0 %v2959
    %3032 = vmatprep.subr.bf16.mxu0 0
    %3033 = vmatpush2.bf16.msra.mxu0 %v2958
    %3034 = vmatprep.subr.bf16.mxu0 0
    %3035 = vmatpush2.bf16.msra.mxu0 %v2957
    %3036 = vmatprep.subr.bf16.mxu0 0
    %3037 = vmatpush2.bf16.msra.mxu0 %v2956
    %3038 = vmatprep.subr.bf16.mxu0 0
    %3039 = vmatpush2.bf16.msra.mxu0 %v2955
    %3040 = vmatprep.subr.bf16.mxu0 0
    %3041 = vmatpush2.bf16.msra.mxu0 %v2954
    %3042 = vmatprep.mubr.bf16.mxu0 %v2744
    %3043 = vmatmul.mubr.bf16.gmra.mxu0 %v2743
    %v3044 = vpop.f32.mrf.mxu0
    %v3045 = vadd.f32 %v2816, %v3044
    %v3046 = vpop.f32.mrf.mxu0
    %v3047 = vpop.f32.mrf.mxu0
    %v3048 = vpop.f32.mrf.mxu0
    %3049 = vdwg.mxu0
    %3050 = vmatprep.subr.bf16.mxu0 0
    %3051 = vmatpush1.bf16.msra.mxu0 %v2969
    %3052 = vmatprep.subr.bf16.mxu0 0
    %3053 = vmatpush1.bf16.msra.mxu0 %v2968
    %3054 = vmatprep.subr.bf16.mxu0 0
    %3055 = vmatpush1.bf16.msra.mxu0 %v2967
    %3056 = vmatprep.subr.bf16.mxu0 0
    %3057 = vmatpush1.bf16.msra.mxu0 %v2966
    %3058 = vmatprep.subr.bf16.mxu0 0
    %3059 = vmatpush1.bf16.msra.mxu0 %v2965
    %3060 = vmatprep.subr.bf16.mxu0 0
    %3061 = vmatpush1.bf16.msra.mxu0 %v2964
    %3062 = vmatprep.subr.bf16.mxu0 0
    %3063 = vmatpush1.bf16.msra.mxu0 %v2963
    %3064 = vmatprep.subr.bf16.mxu0 0
    %3065 = vmatpush1.bf16.msra.mxu0 %v2962
    %3066 = vmatprep.subr.bf16.mxu0 0
    %3067 = vmatpush2.bf16.msra.mxu0 %v2977
    %3068 = vmatprep.subr.bf16.mxu0 0
    %3069 = vmatpush2.bf16.msra.mxu0 %v2976
    %3070 = vmatprep.subr.bf16.mxu0 0
    %3071 = vmatpush2.bf16.msra.mxu0 %v2975
    %3072 = vmatprep.subr.bf16.mxu0 0
    %3073 = vmatpush2.bf16.msra.mxu0 %v2974
    %3074 = vmatprep.subr.bf16.mxu0 0
    %3075 = vmatpush2.bf16.msra.mxu0 %v2973
    %3076 = vmatprep.subr.bf16.mxu0 0
    %3077 = vmatpush2.bf16.msra.mxu0 %v2972
    %3078 = vmatprep.subr.bf16.mxu0 0
    %3079 = vmatpush2.bf16.msra.mxu0 %v2971
    %3080 = vmatprep.subr.bf16.mxu0 0
    %3081 = vmatpush2.bf16.msra.mxu0 %v2970
    %3082 = vmatprep.mubr.bf16.mxu0 %v2746
    %3083 = vmatmul.mubr.bf16.gmra.mxu0 %v2745
    %v3084 = vpop.f32.mrf.mxu0
    %v3085 = vadd.f32 %v3045, %v3084
    %v3086 = vpop.f32.mrf.mxu0
    %v3087 = vpop.f32.mrf.mxu0
    %v3088 = vpop.f32.mrf.mxu0
    %3089 = vdwg.mxu0
    %vm3090 = vcmask 41984
    %3091 = vst.msk [vmem:[#allocation7] sm:$0x3] %vm3090, %v3085
    // Predicated region
    $region66: #{tpu_custom_call.1} parent=1 // pred_check
      _
    $region67: #{tpu_custom_call.1} parent=1 // pred_check_branch
      %3093 = sbr.rel (0) target = $region69
    $region68: #{tpu_custom_call.1} parent=1 // pred_region
      %s3095 = ssub.s32 32, 32
      %3096 = vsyncadd [#allocation4], %s3095
      %s3098 = sshll.u32 [#allocation7], 4
      %s3099 = int_to_ptr.vmem [resolvable:$true] %s3098
      %3101 = dma.vmem_to_hbm [thread:$0]  %s3099, 32, %s14, [#allocation4]
    $region69: #{tpu_custom_call.1} parent=1 // pred_fallthru
      _
    // Predicated region
    $region70: #{tpu_custom_call.1} parent=1 // pred_check
      _
    $region71: #{tpu_custom_call.1} parent=1 // pred_check_branch
      %3103 = sbr.rel (0) target = $region73
    $region72: #{tpu_custom_call.1} parent=1 // pred_region
      %3104 = dma.done [#allocation4], 32
    $region73: #{tpu_custom_call.1} parent=1 // pred_fallthru
      _
    %3105 = vsyncpa [#allocation3], 1
    %3106 = vsyncpa [#allocation6], 1
    %3107 = vsyncpa [#allocation4], 1

</llo_original>
